<compile_context>
chip_gen: v5e
topology: v5e:2x2
jax: 0.10.0
libtpu: 0.0.40
codegen_flags: <defaults>
</compile_context>

<pallas_src>
import functools
import math

import jax
import jax.numpy as jnp
from jax.experimental import pallas as pl
from jax.experimental.pallas import tpu as pltpu

# 48 MiB scoped VMEM: leaves compiler headroom on v7x (64 MiB physical) and is
# plenty for v5e/v6e (128 MiB). Tile targets below keep working sets < ~16 MiB.
VMEM_LIMIT_BYTES = 48 * 1024 * 1024


def _pick_tile(dim, target, quantum):
    """Largest multiple-of-`quantum` divisor of `dim` that is <= target, else full dim.

    Falling back to the full dim always satisfies the (8,128) block constraint
    (block == full array dim); it only risks a large VMEM tile for odd shapes.
    """
    if dim <= target:
        return dim
    t = (min(target, dim) // quantum) * quantum
    while t >= quantum:
        if dim % t == 0:
            return t
        t -= quantum
    return dim


# ----------------------------------------------------------------------------
# Kernel 1: tiled fused linear   out = act(x @ w + b) [+ residual]
#   - bf16 MXU operands, f32 accumulation in VMEM scratch
#   - bias / ReLU / residual-add / output cast only on the final K step
# ----------------------------------------------------------------------------
def _linear_kernel(*refs, activation, has_residual):
    if has_residual:
        x_ref, w_ref, b_ref, r_ref, o_ref, acc_ref = refs
    else:
        x_ref, w_ref, b_ref, o_ref, acc_ref = refs
        r_ref = None

    k = pl.program_id(2)

    @pl.when(k == 0)
    def _():
        acc_ref[...] = jnp.zeros_like(acc_ref)

    acc_ref[...] += jnp.dot(
        x_ref[...], w_ref[...], preferred_element_type=jnp.float32)

    @pl.when(k == pl.num_programs(2) - 1)
    def _():
        out = acc_ref[...] + b_ref[...].astype(jnp.float32)
        if activation == "relu":
            out = jnp.maximum(out, 0.0)
        if r_ref is not None:
            out = out + r_ref[...].astype(jnp.float32)
        o_ref[...] = out.astype(o_ref.dtype)


def linear(x, w, b, residual=None, activation=None, out_dtype=None,
           tm_target=512, tn_target=1024, tk_target=1024):
    # x: (M, K) bf16, w: (K, N) bf16 (pre-transposed once), b: (N,) f32,
    # residual: optional (M, N), added in the last-K epilogue.
    M, K = x.shape
    K2, N = w.shape
    assert K == K2
    out_dtype = out_dtype or x.dtype

    tm = _pick_tile(M, tm_target, 8)
    tn = _pick_tile(N, tn_target, 128)
    tk = _pick_tile(K, tk_target, 128)
    grid = (M // tm, N // tn, K // tk)

    in_specs = [
        pl.BlockSpec((tm, tk), lambda i, j, k: (i, k)),
        pl.BlockSpec((tk, tn), lambda i, j, k: (k, j)),
        pl.BlockSpec((1, tn), lambda i, j, k: (0, j)),
    ]
    operands = [x, w, b.reshape(1, N)]
    if residual is not None:
        # Same tile index as the output => fetched once per (i, j), not per k.
        in_specs.append(pl.BlockSpec((tm, tn), lambda i, j, k: (i, j)))
        operands.append(residual)

    return pl.pallas_call(
        functools.partial(_linear_kernel, activation=activation,
                          has_residual=residual is not None),
        out_shape=jax.ShapeDtypeStruct((M, N), out_dtype),
        grid=grid,
        in_specs=in_specs,
        out_specs=pl.BlockSpec((tm, tn), lambda i, j, k: (i, j)),
        scratch_shapes=[pltpu.VMEM((tm, tn), jnp.float32)],
        compiler_params=pltpu.CompilerParams(
            dimension_semantics=("parallel", "parallel", "arbitrary"),
            vmem_limit_bytes=VMEM_LIMIT_BYTES,
        ),
    )(*operands)


# ----------------------------------------------------------------------------
# Kernel 2: flash-style attention over a packed qkv tensor (N, L, 3*H*Dhp)
#   grid = (N, H, L//tq, L//tkv); one head per grid step (heads fully in grid),
#   so every q/k/v/out block is a contiguous lane-dense (tq|tkv, Dhp) slab.
#   Online-softmax state (m, l, acc) lives in VMEM scratch, carried over the
#   kv axis (last grid dim, "arbitrary"). No L x L score matrix in HBM.
# ----------------------------------------------------------------------------
def _flash_attn_kernel(q_ref, k_ref, v_ref, o_ref, m_ref, l_ref, acc_ref):
    ki = pl.program_id(3)

    @pl.when(ki == 0)
    def _():
        m_ref[...] = jnp.full(m_ref.shape, -jnp.inf, jnp.float32)
        l_ref[...] = jnp.zeros(l_ref.shape, jnp.float32)
        acc_ref[...] = jnp.zeros(acc_ref.shape, jnp.float32)

    q = q_ref[0]                                   # (tq,  Dhp) bf16 (scale pre-folded)
    k = k_ref[0]                                   # (tkv, Dhp) bf16
    v = v_ref[0]                                   # (tkv, Dhp) bf16

    s = jax.lax.dot_general(                       # (tq, tkv) f32, Q.K^T (no transpose)
        q, k, (((1,), (1,)), ((), ())),
        preferred_element_type=jnp.float32)

    m_prev = m_ref[...]
    m_new = jnp.maximum(m_prev, jnp.max(s, axis=-1, keepdims=True))
    alpha = jnp.exp(m_prev - m_new)
    p = jnp.exp(s - m_new)
    l_ref[...] = alpha * l_ref[...] + jnp.sum(p, axis=-1, keepdims=True)
    acc_ref[...] = alpha * acc_ref[...] + jnp.dot(
        p.astype(v.dtype), v, preferred_element_type=jnp.float32)
    m_ref[...] = m_new

    @pl.when(ki == pl.num_programs(3) - 1)
    def _():
        o_ref[0] = (acc_ref[...] *
                    pl.reciprocal(l_ref[...], approx=True)).astype(o_ref.dtype)


def flash_attention(qkv, n_batch, seq_len, num_heads, head_dim_padded,
                    tq_target=256, tkv_target=256):
    # qkv: (N, L, 3*H*Dhp) bf16, q|k|v thirds each laid out as H heads x Dhp lanes.
    N, L, H, Dhp = n_batch, seq_len, num_heads, head_dim_padded
    tq = _pick_tile(L, tq_target, 8)
    tkv = _pick_tile(L, tkv_target, 128)
    grid = (N, H, L // tq, L // tkv)

    def q_map(n, h, qi, ki):
        return (n, qi, h)

    def k_map(n, h, qi, ki):
        return (n, ki, H + h)

    def v_map(n, h, qi, ki):
        return (n, ki, 2 * H + h)

    def o_map(n, h, qi, ki):
        return (n, qi, h)

    return pl.pallas_call(
        _flash_attn_kernel,
        out_shape=jax.ShapeDtypeStruct((N, L, H * Dhp), qkv.dtype),
        grid=grid,
        in_specs=[pl.BlockSpec((1, tq, Dhp), q_map),
                  pl.BlockSpec((1, tkv, Dhp), k_map),
                  pl.BlockSpec((1, tkv, Dhp), v_map)],
        out_specs=pl.BlockSpec((1, tq, Dhp), o_map),
        scratch_shapes=[
            pltpu.VMEM((tq, 1), jnp.float32),      # running max
            pltpu.VMEM((tq, 1), jnp.float32),      # running sum
            pltpu.VMEM((tq, Dhp), jnp.float32),    # output accumulator
        ],
        compiler_params=pltpu.CompilerParams(
            dimension_semantics=("parallel", "parallel", "parallel", "arbitrary"),
            vmem_limit_bytes=VMEM_LIMIT_BYTES,
        ),
    )(qkv, qkv, qkv)


# ----------------------------------------------------------------------------
# Kernel 3: LayerNorm (residual already fused into the preceding GEMM epilogue)
# ----------------------------------------------------------------------------
def _layernorm_kernel(x_ref, g_ref, b_ref, o_ref, *, eps):
    h = x_ref[...].astype(jnp.float32)
    mu = jnp.mean(h, axis=-1, keepdims=True)
    var = jnp.mean(jnp.square(h - mu), axis=-1, keepdims=True)
    out = (h - mu) * jax.lax.rsqrt(var + eps)
    out = out * g_ref[...].astype(jnp.float32) + b_ref[...].astype(jnp.float32)
    o_ref[...] = out.astype(o_ref.dtype)


def layernorm(x, gamma, beta, eps=1e-5, out_dtype=jnp.bfloat16, tm_target=128):
    M, E = x.shape
    tm = _pick_tile(M, tm_target, 8)
    return pl.pallas_call(
        functools.partial(_layernorm_kernel, eps=eps),
        out_shape=jax.ShapeDtypeStruct((M, E), out_dtype),
        grid=(M // tm,),
        in_specs=[
            pl.BlockSpec((tm, E), lambda i: (i, 0)),
            pl.BlockSpec((1, E), lambda i: (0, 0)),
            pl.BlockSpec((1, E), lambda i: (0, 0)),
        ],
        out_specs=pl.BlockSpec((tm, E), lambda i: (i, 0)),
        compiler_params=pltpu.CompilerParams(
            dimension_semantics=("parallel",),
            vmem_limit_bytes=VMEM_LIMIT_BYTES,
        ),
    )(x, gamma.reshape(1, E), beta.reshape(1, E))


# ----------------------------------------------------------------------------
# Full forward pass (glue in plain JAX; one transpose+cast in, one transpose out)
# ----------------------------------------------------------------------------
def transformer_encoder_layer(x, p, num_heads):
    L, N, E = x.shape
    H = num_heads
    Dhp = p["qkv_w"].shape[1] // (3 * H)           # static (from weight shape)

    # (L, N, E) f32 -> (N, L, E) bf16 in one fused XLA transpose+cast: attention
    # tiles become lane-dense (seq on sublanes, head dim on lanes) and every
    # GEMM streams bf16 activations.
    x_t = jnp.transpose(x, (1, 0, 2)).astype(jnp.bfloat16)
    xf = x_t.reshape(N * L, E)

    # --- self attention: fused QKV projection (scale folded into q) ---
    qkv = linear(xf, p["qkv_w"], p["qkv_b"], out_dtype=jnp.bfloat16)
    qkv = qkv.reshape(N, L, 3 * H * Dhp)           # free reshape

    attn = flash_attention(qkv, N, L, H, Dhp)
    attn = attn.reshape(N * L, H * Dhp)            # free reshape

    # out-projection with the residual (x) fused into the last-K epilogue
    h1 = linear(attn, p["out_w"], p["out_b"], residual=xf, out_dtype=jnp.bfloat16)
    out1 = layernorm(h1, p["ln1_g"], p["ln1_b"], out_dtype=jnp.bfloat16)

    # --- FFN: Linear -> ReLU -> [Dropout] -> Linear(+residual) -> [Dropout] ---
    hidden = linear(out1, p["ffn_w1"], p["ffn_b1"], activation="relu",
                    out_dtype=jnp.bfloat16)
    h2 = linear(hidden, p["ffn_w2"], p["ffn_b2"], residual=out1,
                out_dtype=jnp.bfloat16)
    out2 = layernorm(h2, p["ln2_g"], p["ln2_b"], out_dtype=jnp.float32)

    return jnp.transpose(out2.reshape(N, L, E), (1, 0, 2))   # back to (L, N, E)


# ----------------------------------------------------------------------------
# Parameters: PyTorch layouts, then a one-time preparation step:
#   pre-transpose to (in, out), pack QKV into one weight, zero-pad the head dim
#   to a multiple of 128, fold 1/sqrt(Dh) into q, cast weights to bf16.
# ----------------------------------------------------------------------------
def make_torch_params(key, d_model, num_heads):
    del num_heads
    keys = jax.random.split(key, 8)
    s = 0.02
    return {
        "in_proj_w": s * jax.random.normal(keys[0], (3 * d_model, d_model), jnp.float32),
        "in_proj_b": s * jax.random.normal(keys[1], (3 * d_model,), jnp.float32),
        "out_proj_w": s * jax.random.normal(keys[2], (d_model, d_model), jnp.float32),
        "out_proj_b": s * jax.random.normal(keys[3], (d_model,), jnp.float32),
        "ffn_w1": s * jax.random.normal(keys[4], (4 * d_model, d_model), jnp.float32),
        "ffn_b1": s * jax.random.normal(keys[5], (4 * d_model,), jnp.float32),
        "ffn_w2": s * jax.random.normal(keys[6], (d_model, 4 * d_model), jnp.float32),
        "ffn_b2": s * jax.random.normal(keys[7], (d_model,), jnp.float32),
        "ln1_g": jnp.ones((d_model,), jnp.float32),
        "ln1_b": jnp.zeros((d_model,), jnp.float32),
        "ln2_g": jnp.ones((d_model,), jnp.float32),
        "ln2_b": jnp.zeros((d_model,), jnp.float32),
    }


def prepare_params(tp, d_model, num_heads):
    E, H = d_model, num_heads
    Dh = E // H
    Dhp = ((Dh + 127) // 128) * 128                # pad head dim to a lane multiple
    scale = 1.0 / math.sqrt(Dh)
    bf = jnp.bfloat16

    w, b = tp["in_proj_w"], tp["in_proj_b"]        # (3E, E), (3E,)  (torch: out, in)
    q_w, k_w, v_w = w[:E], w[E:2 * E], w[2 * E:]
    q_b, k_b, v_b = b[:E], b[E:2 * E], b[2 * E:]
    q_w, q_b = q_w * scale, q_b * scale            # fold 1/sqrt(Dh) into q once

    def pad_proj(wt, bv):
        # (out=E, in=E) torch layout -> (in=E, H*Dhp) with zero-padded head dims.
        wt = wt.T.reshape(E, H, Dh)
        wt = jnp.pad(wt, ((0, 0), (0, 0), (0, Dhp - Dh))).reshape(E, H * Dhp)
        bv = jnp.pad(bv.reshape(H, Dh), ((0, 0), (0, Dhp - Dh))).reshape(H * Dhp)
        return wt, bv

    qw, qb = pad_proj(q_w, q_b)
    kw, kb = pad_proj(k_w, k_b)
    vw, vb = pad_proj(v_w, v_b)
    qkv_w = jnp.concatenate([qw, kw, vw], axis=1).astype(bf)      # (E, 3*H*Dhp)
    qkv_b = jnp.concatenate([qb, kb, vb]).astype(jnp.float32)

    # out_proj: (E_out, E_in) -> (H*Dhp, E) with zero rows for the padded dims,
    # so the padding is mathematically exact.
    ow = tp["out_proj_w"].T.reshape(H, Dh, E)
    ow = jnp.pad(ow, ((0, 0), (0, Dhp - Dh), (0, 0))).reshape(H * Dhp, E)

    return {
        "qkv_w": qkv_w, "qkv_b": qkv_b,
        "out_w": ow.astype(bf), "out_b": tp["out_proj_b"].astype(jnp.float32),
        "ffn_w1": tp["ffn_w1"].T.astype(bf), "ffn_b1": tp["ffn_b1"].astype(jnp.float32),
        "ffn_w2": tp["ffn_w2"].T.astype(bf), "ffn_b2": tp["ffn_b2"].astype(jnp.float32),
        "ln1_g": tp["ln1_g"], "ln1_b": tp["ln1_b"],
        "ln2_g": tp["ln2_g"], "ln2_b": tp["ln2_b"],
    }


if __name__ == "__main__":
    # Small shapes consistent with the forward pass (d_model / num_heads scaled
    # down from 14848 / 64 for a runnable demo).
    seq_len, batch, d_model, num_heads = 8, 2, 128, 4

    key = jax.random.PRNGKey(0)
    k_x, k_p = jax.random.split(key)
    x = jax.random.normal(k_x, (seq_len, batch, d_model), jnp.float32)
    params = prepare_params(make_torch_params(k_p, d_model, num_heads),
                            d_model, num_heads)

    fwd = jax.jit(transformer_encoder_layer, static_argnames=("num_heads",))
    out = fwd(x, params, num_heads=num_heads)
    jax.block_until_ready(out)
    assert out.shape == (seq_len, batch, d_model)
    assert bool(jnp.all(jnp.isfinite(out)))
    print("KERNEL_OK")
</pallas_src>

<mosaic_0001>
module attributes {stable_mosaic.version = 11 : i64} {
  func.func @_linear_kernel(%arg0: i32, %arg1: i32, %arg2: i32, %arg3: memref<16x128xbf16, #tpu.memory_space<vmem>>, %arg4: memref<128x768xbf16, #tpu.memory_space<vmem>>, %arg5: memref<1x768xf32, #tpu.memory_space<vmem>>, %arg6: memref<16x768xbf16, #tpu.memory_space<vmem>>, %arg7: memref<16x768xf32, #tpu.memory_space<vmem>>) attributes {dimension_semantics = [#tpu.dimension_semantics<parallel>, #tpu.dimension_semantics<parallel>, #tpu.dimension_semantics<arbitrary>], iteration_bounds = array<i64: 1, 2, 1>, scalar_prefetch = 0 : i64, scratch_operands = 1 : i64, tpu.core_type = #tpu.core_type<tc>, window_params = [{transform_indices = @transform_0, window_bounds = array<i64: 16, 128>}, {transform_indices = @transform_1, window_bounds = array<i64: 128, 768>}, {transform_indices = @transform_2, window_bounds = array<i64: 1, 768>}, {transform_indices = @transform_3, window_bounds = array<i64: 16, 768>}]} {
    %c0_i32 = arith.constant 0 : i32
    %0 = arith.cmpi eq, %arg2, %c0_i32 : i32
    %1 = arith.extui %0 : i1 to i32
    %c0_i32_0 = arith.constant 0 : i32
    %2 = arith.cmpi ne, %1, %c0_i32_0 : i32
    scf.if %2 {
      %cst_10 = arith.constant 0.000000e+00 : f32
      %12 = vector.broadcast %cst_10 : f32 to vector<16x768xf32>
      %c0_11 = arith.constant 0 : index
      %c0_12 = arith.constant 0 : index
      %13 = vector.load %arg7[%c0_11, %c0_12] : memref<16x768xf32, #tpu.memory_space<vmem>>, vector<16x768xf32>
      tpu.vector_store %arg7[%c0_11, %c0_12], %12 {strides = array<i32>} : memref<16x768xf32, #tpu.memory_space<vmem>>, vector<16x768xf32>,
    } else {
    }
    %c0 = arith.constant 0 : index
    %c0_1 = arith.constant 0 : index
    %3 = vector.load %arg7[%c0, %c0_1] : memref<16x768xf32, #tpu.memory_space<vmem>>, vector<16x768xf32>
    %c0_2 = arith.constant 0 : index
    %c0_3 = arith.constant 0 : index
    %4 = vector.load %arg3[%c0_2, %c0_3] : memref<16x128xbf16, #tpu.memory_space<vmem>>, vector<16x128xbf16>
    %c0_4 = arith.constant 0 : index
    %c0_5 = arith.constant 0 : index
    %5 = vector.load %arg4[%c0_4, %c0_5] : memref<128x768xbf16, #tpu.memory_space<vmem>>, vector<128x768xbf16>
    %cst = arith.constant dense<0.000000e+00> : vector<16x768xf32>
    %6 = tpu.matmul %4, %5, %cst {dimension_numbers = #tpu.dot_dimension_numbers<[1], [0], [0], [1], [0, 0, 1, 1], [], []>} : vector<16x128xbf16>, vector<128x768xbf16>, vector<16x768xf32> -> vector<16x768xf32>
    %7 = arith.addf %3, %6 : vector<16x768xf32>
    %c0_6 = arith.constant 0 : index
    %c0_7 = arith.constant 0 : index
    %8 = vector.load %arg7[%c0_6, %c0_7] : memref<16x768xf32, #tpu.memory_space<vmem>>, vector<16x768xf32>
    tpu.vector_store %arg7[%c0_6, %c0_7], %7 {strides = array<i32>} : memref<16x768xf32, #tpu.memory_space<vmem>>, vector<16x768xf32>,
    %c0_i32_8 = arith.constant 0 : i32
    %9 = arith.cmpi eq, %arg2, %c0_i32_8 : i32
    %10 = arith.extui %9 : i1 to i32
    %c0_i32_9 = arith.constant 0 : i32
    %11 = arith.cmpi ne, %10, %c0_i32_9 : i32
    scf.if %11 {
      %c0_10 = arith.constant 0 : index
      %c0_11 = arith.constant 0 : index
      %12 = vector.load %arg7[%c0_10, %c0_11] : memref<16x768xf32, #tpu.memory_space<vmem>>, vector<16x768xf32>
      %c0_12 = arith.constant 0 : index
      %c0_13 = arith.constant 0 : index
      %13 = vector.load %arg5[%c0_12, %c0_13] : memref<1x768xf32, #tpu.memory_space<vmem>>, vector<1x768xf32>
      %14 = vector.broadcast %13 : vector<1x768xf32> to vector<16x768xf32>
      %15 = arith.addf %12, %14 : vector<16x768xf32>
      %16 = arith.truncf %15 : vector<16x768xf32> to vector<16x768xbf16>
      %c0_14 = arith.constant 0 : index
      %c0_15 = arith.constant 0 : index
      %17 = vector.load %arg6[%c0_14, %c0_15] : memref<16x768xbf16, #tpu.memory_space<vmem>>, vector<16x768xbf16>
      tpu.vector_store %arg6[%c0_14, %c0_15], %16 {strides = array<i32>} : memref<16x768xbf16, #tpu.memory_space<vmem>>, vector<16x768xbf16>,
    } else {
    }
    return
  }
  func.func @transform_0(%arg0: i32, %arg1: i32, %arg2: i32) -> (i32, i32) {
    %c0_i32 = arith.constant 0 : i32
    return %arg0, %arg2 : i32, i32
  }
  func.func @transform_1(%arg0: i32, %arg1: i32, %arg2: i32) -> (i32, i32) {
    %c0_i32 = arith.constant 0 : i32
    return %arg2, %arg1 : i32, i32
  }
  func.func @transform_2(%arg0: i32, %arg1: i32, %arg2: i32) -> (i32, i32) {
    %c0_i32 = arith.constant 0 : i32
    %c0_i32_0 = arith.constant 0 : i32
    return %c0_i32, %arg1 : i32, i32
  }
  func.func @transform_3(%arg0: i32, %arg1: i32, %arg2: i32) -> (i32, i32) {
    %c0_i32 = arith.constant 0 : i32
    return %arg0, %arg1 : i32, i32
  }
}

module attributes {stable_mosaic.version = 11 : i64} {
  func.func @_linear_kernel(%arg0: i32, %arg1: i32, %arg2: i32, %arg3: memref<16x512xbf16, #tpu.memory_space<vmem>>, %arg4: memref<512x128xbf16, #tpu.memory_space<vmem>>, %arg5: memref<1x128xf32, #tpu.memory_space<vmem>>, %arg6: memref<16x128xbf16, #tpu.memory_space<vmem>>, %arg7: memref<16x128xbf16, #tpu.memory_space<vmem>>, %arg8: memref<16x128xf32, #tpu.memory_space<vmem>>) attributes {dimension_semantics = [#tpu.dimension_semantics<parallel>, #tpu.dimension_semantics<parallel>, #tpu.dimension_semantics<arbitrary>], iteration_bounds = array<i64: 1, 1, 1>, scalar_prefetch = 0 : i64, scratch_operands = 1 : i64, tpu.core_type = #tpu.core_type<tc>, window_params = [{transform_indices = @transform_0, window_bounds = array<i64: 16, 512>}, {transform_indices = @transform_1, window_bounds = array<i64: 512, 128>}, {transform_indices = @transform_2, window_bounds = array<i64: 1, 128>}, {transform_indices = @transform_3, window_bounds = array<i64: 16, 128>}, {transform_indices = @transform_4, window_bounds = array<i64: 16, 128>}]} {
    %c0_i32 = arith.constant 0 : i32
    %0 = arith.cmpi eq, %arg2, %c0_i32 : i32
    %1 = arith.extui %0 : i1 to i32
    %c0_i32_0 = arith.constant 0 : i32
    %2 = arith.cmpi ne, %1, %c0_i32_0 : i32
    scf.if %2 {
      %cst_10 = arith.constant 0.000000e+00 : f32
      %12 = vector.broadcast %cst_10 : f32 to vector<16x128xf32>
      %c0_11 = arith.constant 0 : index
      %c0_12 = arith.constant 0 : index
      %13 = vector.load %arg8[%c0_11, %c0_12] : memref<16x128xf32, #tpu.memory_space<vmem>>, vector<16x128xf32>
      tpu.vector_store %arg8[%c0_11, %c0_12], %12 {strides = array<i32>} : memref<16x128xf32, #tpu.memory_space<vmem>>, vector<16x128xf32>,
    } else {
    }
    %c0 = arith.constant 0 : index
    %c0_1 = arith.constant 0 : index
    %3 = vector.load %arg8[%c0, %c0_1] : memref<16x128xf32, #tpu.memory_space<vmem>>, vector<16x128xf32>
    %c0_2 = arith.constant 0 : index
    %c0_3 = arith.constant 0 : index
    %4 = vector.load %arg3[%c0_2, %c0_3] : memref<16x512xbf16, #tpu.memory_space<vmem>>, vector<16x512xbf16>
    %c0_4 = arith.constant 0 : index
    %c0_5 = arith.constant 0 : index
    %5 = vector.load %arg4[%c0_4, %c0_5] : memref<512x128xbf16, #tpu.memory_space<vmem>>, vector<512x128xbf16>
    %cst = arith.constant dense<0.000000e+00> : vector<16x128xf32>
    %6 = tpu.matmul %4, %5, %cst {dimension_numbers = #tpu.dot_dimension_numbers<[1], [0], [0], [1], [0, 0, 1, 1], [], []>} : vector<16x512xbf16>, vector<512x128xbf16>, vector<16x128xf32> -> vector<16x128xf32>
    %7 = arith.addf %3, %6 : vector<16x128xf32>
    %c0_6 = arith.constant 0 : index
    %c0_7 = arith.constant 0 : index
    %8 = vector.load %arg8[%c0_6, %c0_7] : memref<16x128xf32, #tpu.memory_space<vmem>>, vector<16x128xf32>
    tpu.vector_store %arg8[%c0_6, %c0_7], %7 {strides = array<i32>} : memref<16x128xf32, #tpu.memory_space<vmem>>, vector<16x128xf32>,
    %c0_i32_8 = arith.constant 0 : i32
    %9 = arith.cmpi eq, %arg2, %c0_i32_8 : i32
    %10 = arith.extui %9 : i1 to i32
    %c0_i32_9 = arith.constant 0 : i32
    %11 = arith.cmpi ne, %10, %c0_i32_9 : i32
    scf.if %11 {
      %c0_10 = arith.constant 0 : index
      %c0_11 = arith.constant 0 : index
      %12 = vector.load %arg8[%c0_10, %c0_11] : memref<16x128xf32, #tpu.memory_space<vmem>>, vector<16x128xf32>
      %c0_12 = arith.constant 0 : index
      %c0_13 = arith.constant 0 : index
      %13 = vector.load %arg5[%c0_12, %c0_13] : memref<1x128xf32, #tpu.memory_space<vmem>>, vector<1x128xf32>
      %14 = vector.broadcast %13 : vector<1x128xf32> to vector<16x128xf32>
      %15 = arith.addf %12, %14 : vector<16x128xf32>
      %c0_14 = arith.constant 0 : index
      %c0_15 = arith.constant 0 : index
      %16 = vector.load %arg6[%c0_14, %c0_15] : memref<16x128xbf16, #tpu.memory_space<vmem>>, vector<16x128xbf16>
      %17 = arith.extf %16 : vector<16x128xbf16> to vector<16x128xf32>
      %18 = arith.addf %15, %17 : vector<16x128xf32>
      %19 = arith.truncf %18 : vector<16x128xf32> to vector<16x128xbf16>
      %c0_16 = arith.constant 0 : index
      %c0_17 = arith.constant 0 : index
      %20 = vector.load %arg7[%c0_16, %c0_17] : memref<16x128xbf16, #tpu.memory_space<vmem>>, vector<16x128xbf16>
      tpu.vector_store %arg7[%c0_16, %c0_17], %19 {strides = array<i32>} : memref<16x128xbf16, #tpu.memory_space<vmem>>, vector<16x128xbf16>,
    } else {
    }
    return
  }
  func.func @transform_0(%arg0: i32, %arg1: i32, %arg2: i32) -> (i32, i32) {
    %c0_i32 = arith.constant 0 : i32
    return %arg0, %arg2 : i32, i32
  }
  func.func @transform_1(%arg0: i32, %arg1: i32, %arg2: i32) -> (i32, i32) {
    %c0_i32 = arith.constant 0 : i32
    return %arg2, %arg1 : i32, i32
  }
  func.func @transform_2(%arg0: i32, %arg1: i32, %arg2: i32) -> (i32, i32) {
    %c0_i32 = arith.constant 0 : i32
    %c0_i32_0 = arith.constant 0 : i32
    return %c0_i32, %arg1 : i32, i32
  }
  func.func @transform_3(%arg0: i32, %arg1: i32, %arg2: i32) -> (i32, i32) {
    %c0_i32 = arith.constant 0 : i32
    return %arg0, %arg1 : i32, i32
  }
  func.func @transform_4(%arg0: i32, %arg1: i32, %arg2: i32) -> (i32, i32) {
    %c0_i32 = arith.constant 0 : i32
    return %arg0, %arg1 : i32, i32
  }
}

module attributes {stable_mosaic.version = 11 : i64} {
  func.func @_layernorm_kernel(%arg0: i32, %arg1: memref<16x128xbf16, #tpu.memory_space<vmem>>, %arg2: memref<1x128xf32, #tpu.memory_space<vmem>>, %arg3: memref<1x128xf32, #tpu.memory_space<vmem>>, %arg4: memref<16x128xbf16, #tpu.memory_space<vmem>>) attributes {dimension_semantics = [#tpu.dimension_semantics<parallel>], iteration_bounds = array<i64: 1>, scalar_prefetch = 0 : i64, scratch_operands = 0 : i64, tpu.core_type = #tpu.core_type<tc>, window_params = [{transform_indices = @transform_0, window_bounds = array<i64: 16, 128>}, {pipeline_mode = #tpu.pipeline_mode<synchronous>, transform_indices = @transform_1, window_bounds = array<i64: 1, 128>}, {pipeline_mode = #tpu.pipeline_mode<synchronous>, transform_indices = @transform_2, window_bounds = array<i64: 1, 128>}, {transform_indices = @transform_3, window_bounds = array<i64: 16, 128>}]} {
    %c0 = arith.constant 0 : index
    %c0_0 = arith.constant 0 : index
    %0 = vector.load %arg1[%c0, %c0_0] : memref<16x128xbf16, #tpu.memory_space<vmem>>, vector<16x128xbf16>
    %1 = arith.extf %0 : vector<16x128xbf16> to vector<16x128xf32>
    %cst = arith.constant dense<0.000000e+00> : vector<16xf32>
    %2 = vector.multi_reduction <add>, %1, %cst [1] : vector<16x128xf32> to vector<16xf32>
    %3 = vector.shape_cast %2 : vector<16xf32> to vector<16x1xf32>
    %cst_1 = arith.constant 1.280000e+02 : f32
    %4 = vector.broadcast %cst_1 : f32 to vector<16x1xf32>
    %5 = arith.divf %3, %4 : vector<16x1xf32>
    %6 = vector.broadcast %5 : vector<16x1xf32> to vector<16x128xf32>
    %7 = arith.subf %1, %6 : vector<16x128xf32>
    %8 = arith.mulf %7, %7 : vector<16x128xf32>
    %cst_2 = arith.constant dense<0.000000e+00> : vector<16xf32>
    %9 = vector.multi_reduction <add>, %8, %cst_2 [1] : vector<16x128xf32> to vector<16xf32>
    %10 = vector.shape_cast %9 : vector<16xf32> to vector<16x1xf32>
    %cst_3 = arith.constant 1.280000e+02 : f32
    %11 = vector.broadcast %cst_3 : f32 to vector<16x1xf32>
    %12 = arith.divf %10, %11 : vector<16x1xf32>
    %13 = vector.broadcast %5 : vector<16x1xf32> to vector<16x128xf32>
    %14 = arith.subf %1, %13 : vector<16x128xf32>
    %cst_4 = arith.constant 9.99999974E-6 : f32
    %15 = vector.broadcast %cst_4 : f32 to vector<16x1xf32>
    %16 = arith.addf %12, %15 : vector<16x1xf32>
    %17 = math.rsqrt %16 : vector<16x1xf32>
    %18 = vector.broadcast %17 : vector<16x1xf32> to vector<16x128xf32>
    %19 = arith.mulf %14, %18 : vector<16x128xf32>
    %c0_5 = arith.constant 0 : index
    %c0_6 = arith.constant 0 : index
    %20 = vector.load %arg2[%c0_5, %c0_6] : memref<1x128xf32, #tpu.memory_space<vmem>>, vector<1x128xf32>
    %21 = vector.broadcast %20 : vector<1x128xf32> to vector<16x128xf32>
    %22 = arith.mulf %19, %21 : vector<16x128xf32>
    %c0_7 = arith.constant 0 : index
    %c0_8 = arith.constant 0 : index
    %23 = vector.load %arg3[%c0_7, %c0_8] : memref<1x128xf32, #tpu.memory_space<vmem>>, vector<1x128xf32>
    %24 = vector.broadcast %23 : vector<1x128xf32> to vector<16x128xf32>
    %25 = arith.addf %22, %24 : vector<16x128xf32>
    %26 = arith.truncf %25 : vector<16x128xf32> to vector<16x128xbf16>
    %c0_9 = arith.constant 0 : index
    %c0_10 = arith.constant 0 : index
    %27 = vector.load %arg4[%c0_9, %c0_10] : memref<16x128xbf16, #tpu.memory_space<vmem>>, vector<16x128xbf16>
    tpu.vector_store %arg4[%c0_9, %c0_10], %26 {strides = array<i32>} : memref<16x128xbf16, #tpu.memory_space<vmem>>, vector<16x128xbf16>,
    return
  }
  func.func @transform_0(%arg0: i32) -> (i32, i32) {
    %c0_i32 = arith.constant 0 : i32
    %c0_i32_0 = arith.constant 0 : i32
    return %arg0, %c0_i32 : i32, i32
  }
  func.func @transform_1(%arg0: i32) -> (i32, i32) {
    %c0_i32 = arith.constant 0 : i32
    %c0_i32_0 = arith.constant 0 : i32
    %c0_i32_1 = arith.constant 0 : i32
    return %c0_i32, %c0_i32_0 : i32, i32
  }
  func.func @transform_2(%arg0: i32) -> (i32, i32) {
    %c0_i32 = arith.constant 0 : i32
    %c0_i32_0 = arith.constant 0 : i32
    %c0_i32_1 = arith.constant 0 : i32
    return %c0_i32, %c0_i32_0 : i32, i32
  }
  func.func @transform_3(%arg0: i32) -> (i32, i32) {
    %c0_i32 = arith.constant 0 : i32
    %c0_i32_0 = arith.constant 0 : i32
    return %arg0, %c0_i32 : i32, i32
  }
}

module attributes {stable_mosaic.version = 11 : i64} {
  func.func @_flash_attn_kernel(%arg0: i32, %arg1: i32, %arg2: i32, %arg3: i32, %arg4: memref<1x8x128xbf16, #tpu.memory_space<vmem>>, %arg5: memref<1x8x128xbf16, #tpu.memory_space<vmem>>, %arg6: memref<1x8x128xbf16, #tpu.memory_space<vmem>>, %arg7: memref<1x8x128xbf16, #tpu.memory_space<vmem>>, %arg8: memref<8x1xf32, #tpu.memory_space<vmem>>, %arg9: memref<8x1xf32, #tpu.memory_space<vmem>>, %arg10: memref<8x128xf32, #tpu.memory_space<vmem>>) attributes {dimension_semantics = [#tpu.dimension_semantics<parallel>, #tpu.dimension_semantics<parallel>, #tpu.dimension_semantics<parallel>, #tpu.dimension_semantics<arbitrary>], iteration_bounds = array<i64: 2, 4, 1, 1>, scalar_prefetch = 0 : i64, scratch_operands = 3 : i64, tpu.core_type = #tpu.core_type<tc>, window_params = [{transform_indices = @transform_0, window_bounds = array<i64: 1, 8, 128>}, {transform_indices = @transform_1, window_bounds = array<i64: 1, 8, 128>}, {transform_indices = @transform_2, window_bounds = array<i64: 1, 8, 128>}, {transform_indices = @transform_3, window_bounds = array<i64: 1, 8, 128>}]} {
    %c0_i32 = arith.constant 0 : i32
    %0 = arith.cmpi eq, %arg3, %c0_i32 : i32
    %1 = arith.extui %0 : i1 to i32
    %c0_i32_0 = arith.constant 0 : i32
    %2 = arith.cmpi ne, %1, %c0_i32_0 : i32
    scf.if %2 {
      %cst_26 = arith.constant 0xFF800000 : f32
      %36 = vector.broadcast %cst_26 : f32 to vector<8x1xf32>
      %c0_27 = arith.constant 0 : index
      %c0_28 = arith.constant 0 : index
      %37 = vector.load %arg8[%c0_27, %c0_28] : memref<8x1xf32, #tpu.memory_space<vmem>>, vector<8x1xf32>
      tpu.vector_store %arg8[%c0_27, %c0_28], %36 {strides = array<i32>} : memref<8x1xf32, #tpu.memory_space<vmem>>, vector<8x1xf32>,
      %cst_29 = arith.constant 0.000000e+00 : f32
      %38 = vector.broadcast %cst_29 : f32 to vector<8x1xf32>
      %c0_30 = arith.constant 0 : index
      %c0_31 = arith.constant 0 : index
      %39 = vector.load %arg9[%c0_30, %c0_31] : memref<8x1xf32, #tpu.memory_space<vmem>>, vector<8x1xf32>
      tpu.vector_store %arg9[%c0_30, %c0_31], %38 {strides = array<i32>} : memref<8x1xf32, #tpu.memory_space<vmem>>, vector<8x1xf32>,
      %cst_32 = arith.constant 0.000000e+00 : f32
      %40 = vector.broadcast %cst_32 : f32 to vector<8x128xf32>
      %c0_33 = arith.constant 0 : index
      %c0_34 = arith.constant 0 : index
      %41 = vector.load %arg10[%c0_33, %c0_34] : memref<8x128xf32, #tpu.memory_space<vmem>>, vector<8x128xf32>
      tpu.vector_store %arg10[%c0_33, %c0_34], %40 {strides = array<i32>} : memref<8x128xf32, #tpu.memory_space<vmem>>, vector<8x128xf32>,
    } else {
    }
    %c0 = arith.constant 0 : index
    %c0_1 = arith.constant 0 : index
    %c0_2 = arith.constant 0 : index
    %3 = vector.load %arg4[%c0, %c0_1, %c0_2] : memref<1x8x128xbf16, #tpu.memory_space<vmem>>, vector<1x8x128xbf16>
    %4 = vector.shape_cast %3 : vector<1x8x128xbf16> to vector<8x128xbf16>
    %c0_3 = arith.constant 0 : index
    %c0_4 = arith.constant 0 : index
    %c0_5 = arith.constant 0 : index
    %5 = vector.load %arg5[%c0_3, %c0_4, %c0_5] : memref<1x8x128xbf16, #tpu.memory_space<vmem>>, vector<1x8x128xbf16>
    %6 = vector.shape_cast %5 : vector<1x8x128xbf16> to vector<8x128xbf16>
    %c0_6 = arith.constant 0 : index
    %c0_7 = arith.constant 0 : index
    %c0_8 = arith.constant 0 : index
    %7 = vector.load %arg6[%c0_6, %c0_7, %c0_8] : memref<1x8x128xbf16, #tpu.memory_space<vmem>>, vector<1x8x128xbf16>
    %8 = vector.shape_cast %7 : vector<1x8x128xbf16> to vector<8x128xbf16>
    %cst = arith.constant dense<0.000000e+00> : vector<8x8xf32>
    %9 = tpu.matmul %4, %6, %cst {dimension_numbers = #tpu.dot_dimension_numbers<[1], [1], [0], [0], [0, 0, 1, 0], [], []>} : vector<8x128xbf16>, vector<8x128xbf16>, vector<8x8xf32> -> vector<8x8xf32>
    %c0_9 = arith.constant 0 : index
    %c0_10 = arith.constant 0 : index
    %10 = vector.load %arg8[%c0_9, %c0_10] : memref<8x1xf32, #tpu.memory_space<vmem>>, vector<8x1xf32>
    %cst_11 = arith.constant dense<0xFF800000> : vector<8xf32>
    %11 = vector.multi_reduction <maximumf>, %9, %cst_11 [1] : vector<8x8xf32> to vector<8xf32>
    %12 = vector.shape_cast %11 : vector<8xf32> to vector<8x1xf32>
    %13 = arith.maximumf %10, %12 : vector<8x1xf32>
    %14 = arith.subf %10, %13 : vector<8x1xf32>
    %15 = math.exp %14 : vector<8x1xf32>
    %16 = vector.broadcast %13 : vector<8x1xf32> to vector<8x8xf32>
    %17 = arith.subf %9, %16 : vector<8x8xf32>
    %18 = math.exp %17 : vector<8x8xf32>
    %c0_12 = arith.constant 0 : index
    %c0_13 = arith.constant 0 : index
    %19 = vector.load %arg9[%c0_12, %c0_13] : memref<8x1xf32, #tpu.memory_space<vmem>>, vector<8x1xf32>
    %20 = arith.mulf %15, %19 : vector<8x1xf32>
    %cst_14 = arith.constant dense<0.000000e+00> : vector<8xf32>
    %21 = vector.multi_reduction <add>, %18, %cst_14 [1] : vector<8x8xf32> to vector<8xf32>
    %22 = vector.shape_cast %21 : vector<8xf32> to vector<8x1xf32>
    %23 = arith.addf %20, %22 : vector<8x1xf32>
    %c0_15 = arith.constant 0 : index
    %c0_16 = arith.constant 0 : index
    %24 = vector.load %arg9[%c0_15, %c0_16] : memref<8x1xf32, #tpu.memory_space<vmem>>, vector<8x1xf32>
    tpu.vector_store %arg9[%c0_15, %c0_16], %23 {strides = array<i32>} : memref<8x1xf32, #tpu.memory_space<vmem>>, vector<8x1xf32>,
    %c0_17 = arith.constant 0 : index
    %c0_18 = arith.constant 0 : index
    %25 = vector.load %arg10[%c0_17, %c0_18] : memref<8x128xf32, #tpu.memory_space<vmem>>, vector<8x128xf32>
    %26 = vector.broadcast %15 : vector<8x1xf32> to vector<8x128xf32>
    %27 = arith.mulf %26, %25 : vector<8x128xf32>
    %28 = arith.truncf %18 : vector<8x8xf32> to vector<8x8xbf16>
    %cst_19 = arith.constant dense<0.000000e+00> : vector<8x128xf32>
    %29 = tpu.matmul %28, %8, %cst_19 {dimension_numbers = #tpu.dot_dimension_numbers<[1], [0], [0], [1], [0, 0, 1, 1], [], []>} : vector<8x8xbf16>, vector<8x128xbf16>, vector<8x128xf32> -> vector<8x128xf32>
    %30 = arith.addf %27, %29 : vector<8x128xf32>
    %c0_20 = arith.constant 0 : index
    %c0_21 = arith.constant 0 : index
    %31 = vector.load %arg10[%c0_20, %c0_21] : memref<8x128xf32, #tpu.memory_space<vmem>>, vector<8x128xf32>
    tpu.vector_store %arg10[%c0_20, %c0_21], %30 {strides = array<i32>} : memref<8x128xf32, #tpu.memory_space<vmem>>, vector<8x128xf32>,
    %c0_22 = arith.constant 0 : index
    %c0_23 = arith.constant 0 : index
    %32 = vector.load %arg8[%c0_22, %c0_23] : memref<8x1xf32, #tpu.memory_space<vmem>>, vector<8x1xf32>
    tpu.vector_store %arg8[%c0_22, %c0_23], %13 {strides = array<i32>} : memref<8x1xf32, #tpu.memory_space<vmem>>, vector<8x1xf32>,
    %c0_i32_24 = arith.constant 0 : i32
    %33 = arith.cmpi eq, %arg3, %c0_i32_24 : i32
    %34 = arith.extui %33 : i1 to i32
    %c0_i32_25 = arith.constant 0 : i32
    %35 = arith.cmpi ne, %34, %c0_i32_25 : i32
    scf.if %35 {
      %c0_26 = arith.constant 0 : index
      %c0_27 = arith.constant 0 : index
      %36 = vector.load %arg10[%c0_26, %c0_27] : memref<8x128xf32, #tpu.memory_space<vmem>>, vector<8x128xf32>
      %c0_28 = arith.constant 0 : index
      %c0_29 = arith.constant 0 : index
      %37 = vector.load %arg9[%c0_28, %c0_29] : memref<8x1xf32, #tpu.memory_space<vmem>>, vector<8x1xf32>
      %38 = tpu.reciprocal %37 {approx = true} : vector<8x1xf32> -> vector<8x1xf32>
      %39 = vector.broadcast %38 : vector<8x1xf32> to vector<8x128xf32>
      %40 = arith.mulf %36, %39 : vector<8x128xf32>
      %41 = arith.truncf %40 : vector<8x128xf32> to vector<8x128xbf16>
      %c0_30 = arith.constant 0 : index
      %c0_31 = arith.constant 0 : index
      %c0_32 = arith.constant 0 : index
      %42 = vector.load %arg7[%c0_30, %c0_31, %c0_32] : memref<1x8x128xbf16, #tpu.memory_space<vmem>>, vector<1x8x128xbf16>
      %43 = vector.shape_cast %42 : vector<1x8x128xbf16> to vector<8x128xbf16>
      %44 = vector.shape_cast %41 : vector<8x128xbf16> to vector<1x8x128xbf16>
      tpu.vector_store %arg7[%c0_30, %c0_31, %c0_32], %44 {strides = array<i32>} : memref<1x8x128xbf16, #tpu.memory_space<vmem>>, vector<1x8x128xbf16>,
    } else {
    }
    return
  }
  func.func @transform_0(%arg0: i32, %arg1: i32, %arg2: i32, %arg3: i32) -> (i32, i32, i32) {
    %c0_i32 = arith.constant 0 : i32
    return %arg0, %arg2, %arg1 : i32, i32, i32
  }
  func.func @transform_1(%arg0: i32, %arg1: i32, %arg2: i32, %arg3: i32) -> (i32, i32, i32) {
    %c4_i32 = arith.constant 4 : i32
    %0 = arith.addi %c4_i32, %arg1 : i32
    %c0_i32 = arith.constant 0 : i32
    return %arg0, %arg3, %0 : i32, i32, i32
  }
  func.func @transform_2(%arg0: i32, %arg1: i32, %arg2: i32, %arg3: i32) -> (i32, i32, i32) {
    %c8_i32 = arith.constant 8 : i32
    %0 = arith.addi %c8_i32, %arg1 : i32
    %c0_i32 = arith.constant 0 : i32
    return %arg0, %arg3, %0 : i32, i32, i32
  }
  func.func @transform_3(%arg0: i32, %arg1: i32, %arg2: i32, %arg3: i32) -> (i32, i32, i32) {
    %c0_i32 = arith.constant 0 : i32
    return %arg0, %arg2, %arg1 : i32, i32, i32
  }
}

module attributes {stable_mosaic.version = 11 : i64} {
  func.func @_linear_kernel(%arg0: i32, %arg1: i32, %arg2: i32, %arg3: memref<16x128xbf16, #tpu.memory_space<vmem>>, %arg4: memref<128x512xbf16, #tpu.memory_space<vmem>>, %arg5: memref<1x512xf32, #tpu.memory_space<vmem>>, %arg6: memref<16x512xbf16, #tpu.memory_space<vmem>>, %arg7: memref<16x512xf32, #tpu.memory_space<vmem>>) attributes {dimension_semantics = [#tpu.dimension_semantics<parallel>, #tpu.dimension_semantics<parallel>, #tpu.dimension_semantics<arbitrary>], iteration_bounds = array<i64: 1, 1, 1>, scalar_prefetch = 0 : i64, scratch_operands = 1 : i64, tpu.core_type = #tpu.core_type<tc>, window_params = [{transform_indices = @transform_0, window_bounds = array<i64: 16, 128>}, {transform_indices = @transform_1, window_bounds = array<i64: 128, 512>}, {transform_indices = @transform_2, window_bounds = array<i64: 1, 512>}, {transform_indices = @transform_3, window_bounds = array<i64: 16, 512>}]} {
    %c0_i32 = arith.constant 0 : i32
    %0 = arith.cmpi eq, %arg2, %c0_i32 : i32
    %1 = arith.extui %0 : i1 to i32
    %c0_i32_0 = arith.constant 0 : i32
    %2 = arith.cmpi ne, %1, %c0_i32_0 : i32
    scf.if %2 {
      %cst_10 = arith.constant 0.000000e+00 : f32
      %12 = vector.broadcast %cst_10 : f32 to vector<16x512xf32>
      %c0_11 = arith.constant 0 : index
      %c0_12 = arith.constant 0 : index
      %13 = vector.load %arg7[%c0_11, %c0_12] : memref<16x512xf32, #tpu.memory_space<vmem>>, vector<16x512xf32>
      tpu.vector_store %arg7[%c0_11, %c0_12], %12 {strides = array<i32>} : memref<16x512xf32, #tpu.memory_space<vmem>>, vector<16x512xf32>,
    } else {
    }
    %c0 = arith.constant 0 : index
    %c0_1 = arith.constant 0 : index
    %3 = vector.load %arg7[%c0, %c0_1] : memref<16x512xf32, #tpu.memory_space<vmem>>, vector<16x512xf32>
    %c0_2 = arith.constant 0 : index
    %c0_3 = arith.constant 0 : index
    %4 = vector.load %arg3[%c0_2, %c0_3] : memref<16x128xbf16, #tpu.memory_space<vmem>>, vector<16x128xbf16>
    %c0_4 = arith.constant 0 : index
    %c0_5 = arith.constant 0 : index
    %5 = vector.load %arg4[%c0_4, %c0_5] : memref<128x512xbf16, #tpu.memory_space<vmem>>, vector<128x512xbf16>
    %cst = arith.constant dense<0.000000e+00> : vector<16x512xf32>
    %6 = tpu.matmul %4, %5, %cst {dimension_numbers = #tpu.dot_dimension_numbers<[1], [0], [0], [1], [0, 0, 1, 1], [], []>} : vector<16x128xbf16>, vector<128x512xbf16>, vector<16x512xf32> -> vector<16x512xf32>
    %7 = arith.addf %3, %6 : vector<16x512xf32>
    %c0_6 = arith.constant 0 : index
    %c0_7 = arith.constant 0 : index
    %8 = vector.load %arg7[%c0_6, %c0_7] : memref<16x512xf32, #tpu.memory_space<vmem>>, vector<16x512xf32>
    tpu.vector_store %arg7[%c0_6, %c0_7], %7 {strides = array<i32>} : memref<16x512xf32, #tpu.memory_space<vmem>>, vector<16x512xf32>,
    %c0_i32_8 = arith.constant 0 : i32
    %9 = arith.cmpi eq, %arg2, %c0_i32_8 : i32
    %10 = arith.extui %9 : i1 to i32
    %c0_i32_9 = arith.constant 0 : i32
    %11 = arith.cmpi ne, %10, %c0_i32_9 : i32
    scf.if %11 {
      %c0_10 = arith.constant 0 : index
      %c0_11 = arith.constant 0 : index
      %12 = vector.load %arg7[%c0_10, %c0_11] : memref<16x512xf32, #tpu.memory_space<vmem>>, vector<16x512xf32>
      %c0_12 = arith.constant 0 : index
      %c0_13 = arith.constant 0 : index
      %13 = vector.load %arg5[%c0_12, %c0_13] : memref<1x512xf32, #tpu.memory_space<vmem>>, vector<1x512xf32>
      %14 = vector.broadcast %13 : vector<1x512xf32> to vector<16x512xf32>
      %15 = arith.addf %12, %14 : vector<16x512xf32>
      %cst_14 = arith.constant 0.000000e+00 : f32
      %16 = vector.broadcast %cst_14 : f32 to vector<16x512xf32>
      %17 = arith.maximumf %15, %16 : vector<16x512xf32>
      %18 = arith.truncf %17 : vector<16x512xf32> to vector<16x512xbf16>
      %c0_15 = arith.constant 0 : index
      %c0_16 = arith.constant 0 : index
      %19 = vector.load %arg6[%c0_15, %c0_16] : memref<16x512xbf16, #tpu.memory_space<vmem>>, vector<16x512xbf16>
      tpu.vector_store %arg6[%c0_15, %c0_16], %18 {strides = array<i32>} : memref<16x512xbf16, #tpu.memory_space<vmem>>, vector<16x512xbf16>,
    } else {
    }
    return
  }
  func.func @transform_0(%arg0: i32, %arg1: i32, %arg2: i32) -> (i32, i32) {
    %c0_i32 = arith.constant 0 : i32
    return %arg0, %arg2 : i32, i32
  }
  func.func @transform_1(%arg0: i32, %arg1: i32, %arg2: i32) -> (i32, i32) {
    %c0_i32 = arith.constant 0 : i32
    return %arg2, %arg1 : i32, i32
  }
  func.func @transform_2(%arg0: i32, %arg1: i32, %arg2: i32) -> (i32, i32) {
    %c0_i32 = arith.constant 0 : i32
    %c0_i32_0 = arith.constant 0 : i32
    return %c0_i32, %arg1 : i32, i32
  }
  func.func @transform_3(%arg0: i32, %arg1: i32, %arg2: i32) -> (i32, i32) {
    %c0_i32 = arith.constant 0 : i32
    return %arg0, %arg1 : i32, i32
  }
}

module attributes {stable_mosaic.version = 11 : i64} {
  func.func @_layernorm_kernel(%arg0: i32, %arg1: memref<16x128xbf16, #tpu.memory_space<vmem>>, %arg2: memref<1x128xf32, #tpu.memory_space<vmem>>, %arg3: memref<1x128xf32, #tpu.memory_space<vmem>>, %arg4: memref<16x128xf32, #tpu.memory_space<vmem>>) attributes {dimension_semantics = [#tpu.dimension_semantics<parallel>], iteration_bounds = array<i64: 1>, scalar_prefetch = 0 : i64, scratch_operands = 0 : i64, tpu.core_type = #tpu.core_type<tc>, window_params = [{transform_indices = @transform_0, window_bounds = array<i64: 16, 128>}, {pipeline_mode = #tpu.pipeline_mode<synchronous>, transform_indices = @transform_1, window_bounds = array<i64: 1, 128>}, {pipeline_mode = #tpu.pipeline_mode<synchronous>, transform_indices = @transform_2, window_bounds = array<i64: 1, 128>}, {transform_indices = @transform_3, window_bounds = array<i64: 16, 128>}]} {
    %c0 = arith.constant 0 : index
    %c0_0 = arith.constant 0 : index
    %0 = vector.load %arg1[%c0, %c0_0] : memref<16x128xbf16, #tpu.memory_space<vmem>>, vector<16x128xbf16>
    %1 = arith.extf %0 : vector<16x128xbf16> to vector<16x128xf32>
    %cst = arith.constant dense<0.000000e+00> : vector<16xf32>
    %2 = vector.multi_reduction <add>, %1, %cst [1] : vector<16x128xf32> to vector<16xf32>
    %3 = vector.shape_cast %2 : vector<16xf32> to vector<16x1xf32>
    %cst_1 = arith.constant 1.280000e+02 : f32
    %4 = vector.broadcast %cst_1 : f32 to vector<16x1xf32>
    %5 = arith.divf %3, %4 : vector<16x1xf32>
    %6 = vector.broadcast %5 : vector<16x1xf32> to vector<16x128xf32>
    %7 = arith.subf %1, %6 : vector<16x128xf32>
    %8 = arith.mulf %7, %7 : vector<16x128xf32>
    %cst_2 = arith.constant dense<0.000000e+00> : vector<16xf32>
    %9 = vector.multi_reduction <add>, %8, %cst_2 [1] : vector<16x128xf32> to vector<16xf32>
    %10 = vector.shape_cast %9 : vector<16xf32> to vector<16x1xf32>
    %cst_3 = arith.constant 1.280000e+02 : f32
    %11 = vector.broadcast %cst_3 : f32 to vector<16x1xf32>
    %12 = arith.divf %10, %11 : vector<16x1xf32>
    %13 = vector.broadcast %5 : vector<16x1xf32> to vector<16x128xf32>
    %14 = arith.subf %1, %13 : vector<16x128xf32>
    %cst_4 = arith.constant 9.99999974E-6 : f32
    %15 = vector.broadcast %cst_4 : f32 to vector<16x1xf32>
    %16 = arith.addf %12, %15 : vector<16x1xf32>
    %17 = math.rsqrt %16 : vector<16x1xf32>
    %18 = vector.broadcast %17 : vector<16x1xf32> to vector<16x128xf32>
    %19 = arith.mulf %14, %18 : vector<16x128xf32>
    %c0_5 = arith.constant 0 : index
    %c0_6 = arith.constant 0 : index
    %20 = vector.load %arg2[%c0_5, %c0_6] : memref<1x128xf32, #tpu.memory_space<vmem>>, vector<1x128xf32>
    %21 = vector.broadcast %20 : vector<1x128xf32> to vector<16x128xf32>
    %22 = arith.mulf %19, %21 : vector<16x128xf32>
    %c0_7 = arith.constant 0 : index
    %c0_8 = arith.constant 0 : index
    %23 = vector.load %arg3[%c0_7, %c0_8] : memref<1x128xf32, #tpu.memory_space<vmem>>, vector<1x128xf32>
    %24 = vector.broadcast %23 : vector<1x128xf32> to vector<16x128xf32>
    %25 = arith.addf %22, %24 : vector<16x128xf32>
    %c0_9 = arith.constant 0 : index
    %c0_10 = arith.constant 0 : index
    %26 = vector.load %arg4[%c0_9, %c0_10] : memref<16x128xf32, #tpu.memory_space<vmem>>, vector<16x128xf32>
    tpu.vector_store %arg4[%c0_9, %c0_10], %25 {strides = array<i32>} : memref<16x128xf32, #tpu.memory_space<vmem>>, vector<16x128xf32>,
    return
  }
  func.func @transform_0(%arg0: i32) -> (i32, i32) {
    %c0_i32 = arith.constant 0 : i32
    %c0_i32_0 = arith.constant 0 : i32
    return %arg0, %c0_i32 : i32, i32
  }
  func.func @transform_1(%arg0: i32) -> (i32, i32) {
    %c0_i32 = arith.constant 0 : i32
    %c0_i32_0 = arith.constant 0 : i32
    %c0_i32_1 = arith.constant 0 : i32
    return %c0_i32, %c0_i32_0 : i32, i32
  }
  func.func @transform_2(%arg0: i32) -> (i32, i32) {
    %c0_i32 = arith.constant 0 : i32
    %c0_i32_0 = arith.constant 0 : i32
    %c0_i32_1 = arith.constant 0 : i32
    return %c0_i32, %c0_i32_0 : i32, i32
  }
  func.func @transform_3(%arg0: i32) -> (i32, i32) {
    %c0_i32 = arith.constant 0 : i32
    %c0_i32_0 = arith.constant 0 : i32
    return %arg0, %c0_i32 : i32, i32
  }
}

</mosaic_0001>

<llo_original>
// kernel: transformer_encoder_layer.10
$region0: #{transformer_encoder_layer.10}
  #allocation0 [shape = 'u32[]', space=smem, size = 0x4, offset = 0x4, fixed_abs, tag = 'smem constant byte address 0x4 - core index']
  #allocation1 [shape = 'u32[72,128]{1,0:T(1,128)}', space=vmem, size = 0x9000, scoped, tag = 'internal scratch']
  %s0 = inlined_call_operand.vmem [shape: bf16[16,128], index: 0, kind: input, shape index: {}]
  %s1 = inlined_call_operand.vmem [shape: f32[1,128], index: 1, kind: input, shape index: {}]
  %s2 = inlined_call_operand.vmem [shape: f32[1,128], index: 2, kind: input, shape index: {}]
  %s3 = inlined_call_operand.vmem [shape: bf16[16,128], index: 3, kind: output, shape index: {}]
  %s4 = sld [smem:[#allocation0]]
  $region22: #{transformer_encoder_layer.10} parent=0
    _
  %s6 = ssub.s32 1, %s4
  %s7 = scalar_select 0, %s6, %s4
  // Predicated region
  $region2: #{transformer_encoder_layer.10} parent=0 // pred_check
    _
  $region3: #{transformer_encoder_layer.10} parent=0 // pred_check_branch
    %9 = sbr.rel (0) target = $region5
  $region4: #{transformer_encoder_layer.10} parent=0 // pred_region
    _
  $region5: #{transformer_encoder_layer.10} parent=0 // pred_fallthru
    _
  // Predicated region
  $region6: #{transformer_encoder_layer.10} parent=0 // pred_check
    _
  $region7: #{transformer_encoder_layer.10} parent=0 // pred_check_branch
    %11 = sbr.rel (0) target = $region9
  $region8: #{transformer_encoder_layer.10} parent=0 // pred_region
    _
  $region9: #{transformer_encoder_layer.10} parent=0 // pred_fallthru
    _
  // Predicated region
  $region10: #{transformer_encoder_layer.10} parent=0 // pred_check
    _
  $region11: #{transformer_encoder_layer.10} parent=0 // pred_check_branch
    %13 = sbr.rel (0) target = $region13
  $region12: #{transformer_encoder_layer.10} parent=0 // pred_region
    _
  $region13: #{transformer_encoder_layer.10} parent=0 // pred_fallthru
    _
  %v14 = vld [vmem:[%s0] sm:$0xf]
  %v15 = vld [vmem:[%s0 + $0x4] sm:$0xf]
  %v16 = vunpack.c.l.bf16 %v14
  %v17 = vunpack.c.l.bf16 %v15
  %18 = vadd.xlane.f32.xlu0 %v16
  %v19 = vpop.xlane.xlu0 %18
  %20 = vadd.xlane.f32.xlu0 %v17
  %v21 = vpop.xlane.xlu0 %20
  %v22 = vrcp.pop 128.0
  %v23 = vmul.f32 128.0, %v22
  %v24 = vsub.f32 1.0, %v23
  %v25 = vmul.f32 %v22, %v24
  %v26 = vadd.f32 %v22, %v25
  %vm27 = vweird.f32 %v22
  %v28 = vsel %vm27, %v22, %v26
  %v29 = vmul.f32 %v19, %v28
  %v30 = vmul.f32 %v21, %v28
  %v31 = vsub.f32 %v16, %v29
  %v32 = vsub.f32 %v17, %v30
  %v33 = vmul.f32 %v31, %v31
  %v34 = vmul.f32 %v32, %v32
  %35 = vadd.xlane.f32.xlu0 %v33
  %v36 = vpop.xlane.xlu0 %35
  %37 = vadd.xlane.f32.xlu0 %v34
  %v38 = vpop.xlane.xlu0 %37
  %v39 = vmul.f32 %v36, %v28
  %v40 = vmul.f32 %v38, %v28
  %v41 = vadd.f32 %v39, 1e-05
  %v42 = vadd.f32 %v40, 1e-05
  %v43 = vrsqrt.pop %v41
  %v44 = vmul.f32 %v43, %v41
  %v45 = vmul.f32 %v44, %v43
  %v46 = vmul.f32 0.5, %v45
  %v47 = vsub.f32 1.5, %v46
  %v48 = vmul.f32 %v43, %v47
  %vm49 = vweird.f32 %v41
  %vm50 = vweird.f32 %v43
  %vm51 = vmor %vm49, %vm50
  %v52 = vsel %vm51, %v43, %v48
  %v53 = vrsqrt.pop %v42
  %v54 = vmul.f32 %v53, %v42
  %v55 = vmul.f32 %v54, %v53
  %v56 = vmul.f32 0.5, %v55
  %v57 = vsub.f32 1.5, %v56
  %v58 = vmul.f32 %v53, %v57
  %vm59 = vweird.f32 %v42
  %vm60 = vweird.f32 %v53
  %vm61 = vmor %vm59, %vm60
  %v62 = vsel %vm61, %v53, %v58
  %v63 = vmul.f32 %v31, %v52
  %v64 = vmul.f32 %v32, %v62
  %v65 = vld [vmem:[%s1] sm:$0x1]
  %v67 = vperm.slane %v65, 0
  %v69 = vmul.f32 %v63, %v67
  %v70 = vmul.f32 %v64, %v67
  %v71 = vld [vmem:[%s2] sm:$0x1]
  %v73 = vperm.slane %v71, 0
  %v75 = vadd.f32 %v69, %v73
  %v76 = vadd.f32 %v70, %v73
  %v77 = vpack.c.bf16 %v75, %v75
  %v78 = vpack.c.bf16 %v76, %v76
  %79 = vst [vmem:[%s3] sm:$0xf] %v77
  %80 = vst [vmem:[%s3 + $0x4] sm:$0xf] %v78
  // Predicated region
  $region14: #{transformer_encoder_layer.10} parent=0 // pred_check
    _
  $region15: #{transformer_encoder_layer.10} parent=0 // pred_check_branch
    %82 = sbr.rel (0) target = $region17
  $region16: #{transformer_encoder_layer.10} parent=0 // pred_region
    _
  $region17: #{transformer_encoder_layer.10} parent=0 // pred_fallthru
    _
  // Predicated region
  $region18: #{transformer_encoder_layer.10} parent=0 // pred_check
    _
  $region19: #{transformer_encoder_layer.10} parent=0 // pred_check_branch
    %84 = sbr.rel (0) target = $region21
  $region20: #{transformer_encoder_layer.10} parent=0 // pred_region
    _
  $region21: #{transformer_encoder_layer.10} parent=0 // pred_fallthru
    _

// kernel: transformer_encoder_layer.8
$region0: #{transformer_encoder_layer.8}
  #allocation0 [shape = 'u32[]', space=smem, size = 0x4, offset = 0x4, fixed_abs, tag = 'smem constant byte address 0x4 - core index']
  #allocation1 [shape = 'u32[72,128]{1,0:T(1,128)}', space=vmem, size = 0x9000, scoped, tag = 'internal scratch']
  #allocation2 [shape = 'f32[8,1]{1,0:T(8,128)}', space=vmem, size = 0x1000, scoped, tag = 'scratch operand']
  #allocation3 [shape = 'f32[8,1]{1,0:T(8,128)}', space=vmem, size = 0x1000, scoped, tag = 'scratch operand']
  #allocation4 [shape = 'f32[8,128]{1,0:T(8,128)}', space=vmem, size = 0x1000, scoped, tag = 'scratch operand']
  %s0 = inlined_call_operand.vmem [shape: bf16[2,8,1536], index: 0, kind: input, shape index: {}, may-alias: {0,1,2}]
  %s1 = inlined_call_operand.vmem [shape: bf16[2,8,1536], index: 1, kind: input, shape index: {}, may-alias: {0,1,2}]
  %s2 = inlined_call_operand.vmem [shape: bf16[2,8,1536], index: 2, kind: input, shape index: {}, may-alias: {0,1,2}]
  %s3 = inlined_call_operand.vmem [shape: bf16[2,8,512], index: 3, kind: output, shape index: {}]
  %s4 = sld [smem:[#allocation0]]
  $region53: #{transformer_encoder_layer.8} parent=0
    _
  %s6 = ssub.s32 1, %s4
  %s7 = scalar_select 0, %s6, %s4
  loop: start=0, step=1, limit=10
  $region2: #{transformer_encoder_layer.8} parent=0 // loop_pre_header
    _
  $region3: #{transformer_encoder_layer.8} parent=0 // loop_header
    %s9 = sphi 0, %s13
    %p10 = scmp.ge.s32.totalorder %s9, 10
    %s16 = sphi 0, %s42
    %s17 = sphi 0, %s38
    %s18 = sphi 0, %s34
    %s19 = sphi 0, %s30
    %s20 = sphi 0, %s16
    %s21 = sphi 0, %s17
    %s22 = sphi 0, %s18
    %s23 = sphi 0, %s19
    %s24 = sphi 0, %s20
    %s25 = sphi 0, %s21
    %s26 = sphi 0, %s22
    %s27 = sphi 0, %s23
    %s49 = sphi 0, %s51
    %s52 = sphi 0, %s49
    %s53 = sphi 0, %s52
    %s69 = sphi 0, %s53
    %s81 = sphi 0, %s83
    %s84 = sphi 0, %s81
    %s85 = sphi 0, %s84
    %s101 = sphi 0, %s85
    %s113 = sphi 0, %s115
    %s116 = sphi 0, %s113
    %s117 = sphi 0, %s116
    %s133 = sphi 0, %s117
    %s143 = sphi 0, %s145
    %s146 = sphi 0, %s143
    %s147 = sphi 0, %s146
    %s163 = sphi 0, %s147
  $region4: #{transformer_encoder_layer.8} parent=0 // loop_header_branch
    %12 = sbr.rel (%p10) target = $region8
  $region5: #{transformer_encoder_layer.8} parent=0 // loop_body
    %s14 = ssub.s32 %s9, 1
    %s15 = ssub.s32 %s9, 2
    %s28 = sadd.s32 1, %s19
    %p29 = scmp.ge.s32.totalorder %s28, 1
    %s30 = scalar_select %p29, 0, %s28
    %s31 = sadd.s32 1, %s18
    %s32 = scalar_select %p29, %s31, %s18
    %p33 = scmp.ge.s32.totalorder %s32, 1
    %s34 = scalar_select %p33, 0, %s32
    %s35 = sadd.s32 1, %s17
    %s36 = scalar_select %p33, %s35, %s17
    %p37 = scmp.ge.s32.totalorder %s36, 4
    %s38 = scalar_select %p37, 0, %s36
    %s39 = sadd.s32 1, %s16
    %s40 = scalar_select %p37, %s39, %s16
    %p41 = scmp.ge.s32.totalorder %s40, 2
    %s42 = scalar_select %p41, 0, %s40
    %s43 = ssub.s32 %s16, %s42
    %s44 = ssub.s32 %s18, %s34
    %s45 = sor.u32 %s43, %s44
    %s46 = ssub.s32 %s17, %s38
    %s47 = sor.u32 %s45, %s46
    %p48 = scmp.eq.s32.totalorder %s47, 0
    %s50 = sadd.s32 %s49, 1
    %s51 = scalar_select %p48, %s49, %s50
    %p54 = pneg %p48
    %p55 = scmp.eq.s32.totalorder %s9, 7
    %p56 = por %p54, %p55
    %p57 = scmp.ne.s32.totalorder %s49, %s52
    %p58 = scmp.eq.s32.totalorder %s9, 0
    %p59 = por %p57, %p58
    %p60 = scmp.ne.s32.totalorder %s49, %s52
    %p61 = scmp.eq.s32.totalorder %s14, 7
    %p62 = por %p60, %p61
    %p63 = scmp.ne.s32.totalorder %s52, %s53
    %p64 = scmp.eq.s32.totalorder %s14, 0
    %p65 = por %p63, %p64
    %p66 = scmp.ne.s32.totalorder %s52, %s53
    %p67 = scmp.eq.s32.totalorder %s15, 7
    %p68 = por %p66, %p67
    %p70 = scmp.ne.s32.totalorder %s53, %s69
    %p71 = scmp.eq.s32.totalorder %s15, 0
    %p72 = por %p70, %p71
    %s73 = sadd.s32 %s17, 4
    %s74 = sadd.s32 %s38, 4
    %s75 = ssub.s32 %s16, %s42
    %s76 = ssub.s32 %s19, %s30
    %s77 = sor.u32 %s75, %s76
    %s78 = ssub.s32 %s73, %s74
    %s79 = sor.u32 %s77, %s78
    %p80 = scmp.eq.s32.totalorder %s79, 0
    %s82 = sadd.s32 %s81, 1
    %s83 = scalar_select %p80, %s81, %s82
    %p86 = pneg %p80
    %p87 = scmp.eq.s32.totalorder %s9, 7
    %p88 = por %p86, %p87
    %p89 = scmp.ne.s32.totalorder %s81, %s84
    %p90 = scmp.eq.s32.totalorder %s9, 0
    %p91 = por %p89, %p90
    %p92 = scmp.ne.s32.totalorder %s81, %s84
    %p93 = scmp.eq.s32.totalorder %s14, 7
    %p94 = por %p92, %p93
    %p95 = scmp.ne.s32.totalorder %s84, %s85
    %p96 = scmp.eq.s32.totalorder %s14, 0
    %p97 = por %p95, %p96
    %p98 = scmp.ne.s32.totalorder %s84, %s85
    %p99 = scmp.eq.s32.totalorder %s15, 7
    %p100 = por %p98, %p99
    %p102 = scmp.ne.s32.totalorder %s85, %s101
    %p103 = scmp.eq.s32.totalorder %s15, 0
    %p104 = por %p102, %p103
    %s105 = sadd.s32 %s17, 8
    %s106 = sadd.s32 %s38, 8
    %s107 = ssub.s32 %s16, %s42
    %s108 = ssub.s32 %s19, %s30
    %s109 = sor.u32 %s107, %s108
    %s110 = ssub.s32 %s105, %s106
    %s111 = sor.u32 %s109, %s110
    %p112 = scmp.eq.s32.totalorder %s111, 0
    %s114 = sadd.s32 %s113, 1
    %s115 = scalar_select %p112, %s113, %s114
    %p118 = pneg %p112
    %p119 = scmp.eq.s32.totalorder %s9, 7
    %p120 = por %p118, %p119
    %p121 = scmp.ne.s32.totalorder %s113, %s116
    %p122 = scmp.eq.s32.totalorder %s9, 0
    %p123 = por %p121, %p122
    %p124 = scmp.ne.s32.totalorder %s113, %s116
    %p125 = scmp.eq.s32.totalorder %s14, 7
    %p126 = por %p124, %p125
    %p127 = scmp.ne.s32.totalorder %s116, %s117
    %p128 = scmp.eq.s32.totalorder %s14, 0
    %p129 = por %p127, %p128
    %p130 = scmp.ne.s32.totalorder %s116, %s117
    %p131 = scmp.eq.s32.totalorder %s15, 7
    %p132 = por %p130, %p131
    %p134 = scmp.ne.s32.totalorder %s117, %s133
    %p135 = scmp.eq.s32.totalorder %s15, 0
    %p136 = por %p134, %p135
    %s137 = ssub.s32 %s16, %s42
    %s138 = ssub.s32 %s18, %s34
    %s139 = sor.u32 %s137, %s138
    %s140 = ssub.s32 %s17, %s38
    %s141 = sor.u32 %s139, %s140
    %p142 = scmp.eq.s32.totalorder %s141, 0
    %s144 = sadd.s32 %s143, 1
    %s145 = scalar_select %p142, %s143, %s144
    %p148 = pneg %p142
    %p149 = scmp.eq.s32.totalorder %s9, 7
    %p150 = por %p148, %p149
    %p151 = scmp.ne.s32.totalorder %s143, %s146
    %p152 = scmp.eq.s32.totalorder %s9, 0
    %p153 = por %p151, %p152
    %p154 = scmp.ne.s32.totalorder %s143, %s146
    %p155 = scmp.eq.s32.totalorder %s14, 7
    %p156 = por %p154, %p155
    %p157 = scmp.ne.s32.totalorder %s146, %s147
    %p158 = scmp.eq.s32.totalorder %s14, 0
    %p159 = por %p157, %p158
    %p160 = scmp.ne.s32.totalorder %s146, %s147
    %p161 = scmp.eq.s32.totalorder %s15, 7
    %p162 = por %p160, %p161
    %p164 = scmp.ne.s32.totalorder %s147, %s163
    %p165 = scmp.eq.s32.totalorder %s15, 0
    %p166 = por %p164, %p165
    %p167 = scmp.le.s32.totalorder 1, %s9
    %p168 = scmp.lt.s32.totalorder %s9, 9
    %p169 = pnand %p167, %p168
    %p170 = pneg %p169
    // Predicated region
    $region9: #{transformer_encoder_layer.8} parent=5 // pred_check
      _
    $region10: #{transformer_encoder_layer.8} parent=5 // pred_check_branch
      %172 = sbr.rel (%p169) target = $region12
    $region11: #{transformer_encoder_layer.8} parent=5 // pred_region
      %s173 = ssub.s32 %s9, 1
    $region12: #{transformer_encoder_layer.8} parent=5 // pred_fallthru
      _
    %p174 = scmp.lt.s32.totalorder %s9, 8
    // Predicated region
    $region13: #{transformer_encoder_layer.8} parent=5 // pred_check
      %p175 = pneg %p174
    $region14: #{transformer_encoder_layer.8} parent=5 // pred_check_branch
      %177 = sbr.rel (%p175) target = $region16
    $region15: #{transformer_encoder_layer.8} parent=5 // pred_region
      // Predicated region
      $region17: #{transformer_encoder_layer.8} parent=15 // pred_check
        %p178 = pneg %p59
      $region18: #{transformer_encoder_layer.8} parent=15 // pred_check_branch
        %180 = sbr.rel (%p178) target = $region20
      $region19: #{transformer_encoder_layer.8} parent=15 // pred_region
        %p181 = scmp.lt.s32.totalorder %s16, 1
        %s182 = scalar_select %p181, %s16, 1
        %p183 = scmp.lt.s32.totalorder %s18, 0
        %s184 = scalar_select %p183, %s18, 0
        %p185 = scmp.lt.s32.totalorder %s17, 11
        %s186 = scalar_select %p185, %s17, 11
        %s187 = smul.addr %s184, 12
        %s188 = sadd.s32 %s186, %s187
        %s189 = smul.addr %s182, 12
        %s190 = sadd.s32 %s188, %s189
        %s191 = smul.addr %s190, 4
        %s192 = scalar_lea.vmem %s0, %s191
      $region20: #{transformer_encoder_layer.8} parent=15 // pred_fallthru
        _
      // Predicated region
      $region21: #{transformer_encoder_layer.8} parent=15 // pred_check
        %p193 = pneg %p91
      $region22: #{transformer_encoder_layer.8} parent=15 // pred_check_branch
        %195 = sbr.rel (%p193) target = $region24
      $region23: #{transformer_encoder_layer.8} parent=15 // pred_region
        %s196 = sadd.s32 %s17, 4
        %p197 = scmp.lt.s32.totalorder %s16, 1
        %s198 = scalar_select %p197, %s16, 1
        %p199 = scmp.lt.s32.totalorder %s19, 0
        %s200 = scalar_select %p199, %s19, 0
        %p201 = scmp.lt.s32.totalorder %s196, 11
        %s202 = scalar_select %p201, %s196, 11
        %s203 = smul.addr %s200, 12
        %s204 = sadd.s32 %s202, %s203
        %s205 = smul.addr %s198, 12
        %s206 = sadd.s32 %s204, %s205
        %s207 = smul.addr %s206, 4
        %s208 = scalar_lea.vmem %s1, %s207
        %s209 = sadd.s32 %s17, 4
      $region24: #{transformer_encoder_layer.8} parent=15 // pred_fallthru
        _
      // Predicated region
      $region25: #{transformer_encoder_layer.8} parent=15 // pred_check
        %p210 = pneg %p123
      $region26: #{transformer_encoder_layer.8} parent=15 // pred_check_branch
        %212 = sbr.rel (%p210) target = $region28
      $region27: #{transformer_encoder_layer.8} parent=15 // pred_region
        %s213 = sadd.s32 %s17, 8
        %p214 = scmp.lt.s32.totalorder %s16, 1
        %s215 = scalar_select %p214, %s16, 1
        %p216 = scmp.lt.s32.totalorder %s19, 0
        %s217 = scalar_select %p216, %s19, 0
        %p218 = scmp.lt.s32.totalorder %s213, 11
        %s219 = scalar_select %p218, %s213, 11
        %s220 = smul.addr %s217, 12
        %s221 = sadd.s32 %s219, %s220
        %s222 = smul.addr %s215, 12
        %s223 = sadd.s32 %s221, %s222
        %s224 = smul.addr %s223, 4
        %s225 = scalar_lea.vmem %s2, %s224
        %s226 = sadd.s32 %s17, 8
      $region28: #{transformer_encoder_layer.8} parent=15 // pred_fallthru
        _
    $region16: #{transformer_encoder_layer.8} parent=5 // pred_fallthru
      _
    %p227 = scmp.le.s32.totalorder 1, %s9
    %p228 = scmp.lt.s32.totalorder %s9, 9
    %p229 = pnand %p227, %p228
    %p230 = pneg %p229
    // Predicated region
    $region29: #{transformer_encoder_layer.8} parent=5 // pred_check
      _
    $region30: #{transformer_encoder_layer.8} parent=5 // pred_check_branch
      %232 = sbr.rel (%p229) target = $region32
    $region31: #{transformer_encoder_layer.8} parent=5 // pred_region
      %s233 = ssub.s32 %s9, 1
      %p234 = scmp.lt.s32.totalorder %s20, 1
      %s235 = scalar_select %p234, %s20, 1
      %p236 = scmp.lt.s32.totalorder %s22, 0
      %s237 = scalar_select %p236, %s22, 0
      %p238 = scmp.lt.s32.totalorder %s21, 11
      %s239 = scalar_select %p238, %s21, 11
      %s240 = smul.addr %s237, 12
      %s241 = sadd.s32 %s239, %s240
      %s242 = smul.addr %s235, 12
      %s243 = sadd.s32 %s241, %s242
      %s244 = smul.addr %s243, 4
      %s245 = scalar_lea.vmem %s0, %s244
      %p246 = pneg %p65
      %p247 = pneg %p62
      %s248 = sadd.s32 %s21, 4
      %p249 = scmp.lt.s32.totalorder %s20, 1
      %s250 = scalar_select %p249, %s20, 1
      %p251 = scmp.lt.s32.totalorder %s23, 0
      %s252 = scalar_select %p251, %s23, 0
      %p253 = scmp.lt.s32.totalorder %s248, 11
      %s254 = scalar_select %p253, %s248, 11
      %s255 = smul.addr %s252, 12
      %s256 = sadd.s32 %s254, %s255
      %s257 = smul.addr %s250, 12
      %s258 = sadd.s32 %s256, %s257
      %s259 = smul.addr %s258, 4
      %s260 = scalar_lea.vmem %s1, %s259
      %p261 = pneg %p97
      %p262 = pneg %p94
      %s263 = sadd.s32 %s21, 8
      %p264 = scmp.lt.s32.totalorder %s20, 1
      %s265 = scalar_select %p264, %s20, 1
      %p266 = scmp.lt.s32.totalorder %s23, 0
      %s267 = scalar_select %p266, %s23, 0
      %p268 = scmp.lt.s32.totalorder %s263, 11
      %s269 = scalar_select %p268, %s263, 11
      %s270 = smul.addr %s267, 12
      %s271 = sadd.s32 %s269, %s270
      %s272 = smul.addr %s265, 12
      %s273 = sadd.s32 %s271, %s272
      %s274 = smul.addr %s273, 4
      %s275 = scalar_lea.vmem %s2, %s274
      %p276 = pneg %p129
      %p277 = pneg %p126
      %p278 = pneg %p159
      %p279 = pneg %p156
      %p280 = scmp.lt.s32.totalorder %s20, 1
      %s281 = scalar_select %p280, %s20, 1
      %p282 = scmp.lt.s32.totalorder %s22, 0
      %s283 = scalar_select %p282, %s22, 0
      %p284 = scmp.lt.s32.totalorder %s21, 3
      %s285 = scalar_select %p284, %s21, 3
      %s286 = smul.addr %s283, 4
      %s287 = sadd.s32 %s285, %s286
      %s288 = smul.addr %s281, 4
      %s289 = sadd.s32 %s287, %s288
      %s290 = smul.addr %s289, 4
      %s291 = scalar_lea.vmem %s3, %s290
      %p292 = scmp.lt.s32.totalorder %s20, 1
      %s293 = scalar_select %p292, %s20, 1
      %p294 = scmp.lt.s32.totalorder %s22, 0
      %s295 = scalar_select %p294, %s22, 0
      %p296 = scmp.lt.s32.totalorder %s21, 11
      %s297 = scalar_select %p296, %s21, 11
      %s298 = smul.addr %s295, 12
      %s299 = sadd.s32 %s297, %s298
      %s300 = smul.addr %s293, 12
      %s301 = sadd.s32 %s299, %s300
      %s302 = smul.addr %s301, 4
      %s303 = scalar_lea.vmem %s0, %s302
      %s304 = sadd.s32 %s21, 4
      %p305 = scmp.lt.s32.totalorder %s20, 1
      %s306 = scalar_select %p305, %s20, 1
      %p307 = scmp.lt.s32.totalorder %s23, 0
      %s308 = scalar_select %p307, %s23, 0
      %p309 = scmp.lt.s32.totalorder %s304, 11
      %s310 = scalar_select %p309, %s304, 11
      %s311 = smul.addr %s308, 12
      %s312 = sadd.s32 %s310, %s311
      %s313 = smul.addr %s306, 12
      %s314 = sadd.s32 %s312, %s313
      %s315 = smul.addr %s314, 4
      %s316 = scalar_lea.vmem %s1, %s315
      %s317 = sadd.s32 %s21, 4
      %s318 = sadd.s32 %s21, 8
      %p319 = scmp.lt.s32.totalorder %s20, 1
      %s320 = scalar_select %p319, %s20, 1
      %p321 = scmp.lt.s32.totalorder %s23, 0
      %s322 = scalar_select %p321, %s23, 0
      %p323 = scmp.lt.s32.totalorder %s318, 11
      %s324 = scalar_select %p323, %s318, 11
      %s325 = smul.addr %s322, 12
      %s326 = sadd.s32 %s324, %s325
      %s327 = smul.addr %s320, 12
      %s328 = sadd.s32 %s326, %s327
      %s329 = smul.addr %s328, 4
      %s330 = scalar_lea.vmem %s2, %s329
      %s331 = sadd.s32 %s21, 8
      %p332 = scmp.lt.s32.totalorder %s20, 1
      %s333 = scalar_select %p332, %s20, 1
      %p334 = scmp.lt.s32.totalorder %s22, 0
      %s335 = scalar_select %p334, %s22, 0
      %p336 = scmp.lt.s32.totalorder %s21, 3
      %s337 = scalar_select %p336, %s21, 3
      %s338 = smul.addr %s335, 4
      %s339 = sadd.s32 %s337, %s338
      %s340 = smul.addr %s333, 4
      %s341 = sadd.s32 %s339, %s340
      %s342 = smul.addr %s341, 4
      %s343 = scalar_lea.vmem %s3, %s342
      %p345 = scmp.eq.s32.totalorder %s23, 0
      // Predicated region
      $region33: #{transformer_encoder_layer.8} parent=31 // pred_check
        %p346 = pneg %p345
      $region34: #{transformer_encoder_layer.8} parent=31 // pred_check_branch
        %348 = sbr.rel (%p346) target = $region36
      $region35: #{transformer_encoder_layer.8} parent=31 // pred_region
        %vm349 = vcmask 7168
        %350 = vst.msk [vmem:[#allocation2] sm:$0xff] %vm349, -inf
        %351 = vst.msk [vmem:[#allocation3] sm:$0xff] %vm349, 0.0
        %352 = vst [vmem:[#allocation4] sm:$0xff] 0.0
      $region36: #{transformer_encoder_layer.8} parent=31 // pred_fallthru
        _
      %v353 = vld [vmem:[%s303] sm:$0xf]
      %v354 = vld [vmem:[%s316] sm:$0xf]
      %v355 = vld [vmem:[%s330] sm:$0xf]
      %356 = vmatpush.bf16.xpose.msra.mxu0 0
      %357 = vmatpush.bf16.xpose.msra.mxu0 0
      %358 = vmatpush.bf16.xpose.msra.mxu0 0
      %359 = vmatpush.bf16.xpose.msra.mxu0 0
      %360 = vmatpush.bf16.xpose.msra.mxu0 0
      %361 = vmatpush.bf16.xpose.msra.mxu0 0
      %362 = vmatpush.bf16.xpose.msra.mxu0 0
      %363 = vmatpush.bf16.xpose.msra.mxu0 %v354
      %364 = vmatmul.bf16.gmra.mxu0 %v353
      %v365 = vpop.f32.mrf.mxu0
      %v366 = vadd.f32 0.0, %v365
      %v367 = vpop.f32.mrf.mxu0
      %368 = vdwg.mxu0
      %v369 = vld [vmem:[#allocation2] sm:$0xff]
      %vm370 = vcmask 64512
      %v371 = vsel %vm370, %v366, -inf
      %372 = vmax.xlane.f32.xlu0 %v371
      %v373 = vpop.xlane.xlu0 %372
      %v374 = vmax.f32 %v369, %v373
      %v375 = vsub.f32 %v369, %v374
      %v376 = vmul.f32 %v375, 1.442695
      %v377 = vpow.pop %v376
      %379 = vset.pattern.permute.xlu0 0
      %380 = vperm.xlu0 %379, %v374
      %v381 = vpop.permute.xlu0 %380
      %v383 = vsub.f32 %v366, %v381
      %v384 = vmul.f32 %v383, 1.442695
      %v385 = vpow.pop %v384
      %v386 = vld [vmem:[#allocation3] sm:$0xff]
      %v387 = vmul.f32 %v377, %v386
      %v388 = vsel %vm370, %v385, 0.0
      %389 = vadd.xlane.f32.xlu0 %v388
      %v390 = vpop.xlane.xlu0 %389
      %v391 = vadd.f32 %v387, %v390
      %vm392 = vcmask 7168
      %393 = vst.msk [vmem:[#allocation3] sm:$0xff] %vm392, %v391
      %v394 = vld [vmem:[#allocation4] sm:$0xff]
      %396 = vset.pattern.permute.xlu0 0
      %397 = vperm.xlu0 %396, %v377
      %v398 = vpop.permute.xlu0 %397
      %v400 = vmul.f32 %v398, %v394
      %v401 = vpack.c.bf16 %v385, %v385
      %v403 = vsel %vm370, %v401, 0
      %vm405 = vcmask 1043456
      %v407 = vsel %vm405, %v355, 0
      %409 = vmatpush.bf16.msra.mxu0 0
      %410 = vmatpush.bf16.msra.mxu0 0
      %411 = vmatpush.bf16.msra.mxu0 0
      %412 = vmatpush.bf16.msra.mxu0 0
      %413 = vmatpush.bf16.msra.mxu0 0
      %414 = vmatpush.bf16.msra.mxu0 0
      %415 = vmatpush.bf16.msra.mxu0 0
      %416 = vmatpush.bf16.msra.mxu0 %v407
      %417 = vmatmul.bf16.gmra.mxu0 %v403
      %v418 = vpop.f32.mrf.mxu0
      %v419 = vadd.f32 0.0, %v418
      %v420 = vpop.f32.mrf.mxu0
      %421 = vdwg.mxu0
      %v422 = vadd.f32 %v400, %v419
      %423 = vst [vmem:[#allocation4] sm:$0xff] %v422
      %424 = vst.msk [vmem:[#allocation2] sm:$0xff] %vm392, %v374
      // Predicated region
      $region37: #{transformer_encoder_layer.8} parent=31 // pred_check
        %p425 = pneg %p345
      $region38: #{transformer_encoder_layer.8} parent=31 // pred_check_branch
        %427 = sbr.rel (%p425) target = $region40
      $region39: #{transformer_encoder_layer.8} parent=31 // pred_region
        %v428 = vld [vmem:[#allocation4] sm:$0xff]
        %v429 = vld [vmem:[#allocation3] sm:$0xff]
        %v430 = vrcp.pop %v429
        %432 = vset.pattern.permute.xlu0 0
        %433 = vperm.xlu0 %432, %v430
        %v434 = vpop.permute.xlu0 %433
        %v436 = vmul.f32 %v428, %v434
        %v437 = vpack.c.bf16 %v436, %v436
        %438 = vst [vmem:[%s343] sm:$0xf] %v437
      $region40: #{transformer_encoder_layer.8} parent=31 // pred_fallthru
        _
      %p439 = scmp.lt.s32.totalorder %s20, 1
      %s440 = scalar_select %p439, %s20, 1
      %p441 = scmp.lt.s32.totalorder %s22, 0
      %s442 = scalar_select %p441, %s22, 0
      %p443 = scmp.lt.s32.totalorder %s21, 3
      %s444 = scalar_select %p443, %s21, 3
      %s445 = smul.addr %s442, 4
      %s446 = sadd.s32 %s444, %s445
      %s447 = smul.addr %s440, 4
      %s448 = sadd.s32 %s446, %s447
      %s449 = smul.addr %s448, 4
      %s450 = scalar_lea.vmem %s3, %s449
      // Predicated region
      $region41: #{transformer_encoder_layer.8} parent=31 // pred_check
        %p451 = pneg %p156
      $region42: #{transformer_encoder_layer.8} parent=31 // pred_check_branch
        %453 = sbr.rel (%p451) target = $region44
      $region43: #{transformer_encoder_layer.8} parent=31 // pred_region
        _
      $region44: #{transformer_encoder_layer.8} parent=31 // pred_fallthru
        _
    $region32: #{transformer_encoder_layer.8} parent=5 // pred_fallthru
      _
    %p454 = scmp.le.s32.totalorder 2, %s9
    // Predicated region
    $region45: #{transformer_encoder_layer.8} parent=5 // pred_check
      %p455 = pneg %p454
    $region46: #{transformer_encoder_layer.8} parent=5 // pred_check_branch
      %457 = sbr.rel (%p455) target = $region48
    $region47: #{transformer_encoder_layer.8} parent=5 // pred_region
      %s458 = ssub.s32 %s9, 2
      // Predicated region
      $region49: #{transformer_encoder_layer.8} parent=47 // pred_check
        %p459 = pneg %p162
      $region50: #{transformer_encoder_layer.8} parent=47 // pred_check_branch
        %461 = sbr.rel (%p459) target = $region52
      $region51: #{transformer_encoder_layer.8} parent=47 // pred_region
        %p462 = scmp.lt.s32.totalorder %s24, 1
        %s463 = scalar_select %p462, %s24, 1
        %p464 = scmp.lt.s32.totalorder %s26, 0
        %s465 = scalar_select %p464, %s26, 0
        %p466 = scmp.lt.s32.totalorder %s25, 3
        %s467 = scalar_select %p466, %s25, 3
        %s468 = smul.addr %s465, 4
        %s469 = sadd.s32 %s467, %s468
        %s470 = smul.addr %s463, 4
        %s471 = sadd.s32 %s469, %s470
        %s472 = smul.addr %s471, 4
        %s473 = scalar_lea.vmem %s3, %s472
      $region52: #{transformer_encoder_layer.8} parent=47 // pred_fallthru
        _
    $region48: #{transformer_encoder_layer.8} parent=5 // pred_fallthru
      _
  $region6: #{transformer_encoder_layer.8} parent=0 // loop_footer
    %s13 = sadd.s32 1, %s9
  $region7: #{transformer_encoder_layer.8} parent=0 // loop_footer_branch
    %8 = sbr.rel target = $region3
  $region8: #{transformer_encoder_layer.8} parent=0 // loop_exit
    _

// kernel: transformer_encoder_layer.9
$region0: #{transformer_encoder_layer.9}
  #allocation0 [shape = 'u32[]', space=smem, size = 0x4, offset = 0x4, fixed_abs, tag = 'smem constant byte address 0x4 - core index']
  #allocation1 [shape = 'u32[72,128]{1,0:T(1,128)}', space=vmem, size = 0x9000, scoped, tag = 'internal scratch']
  #allocation2 [shape = 'f32[16,128]{1,0:T(8,128)}', space=vmem, size = 0x2000, scoped, tag = 'scratch operand']
  %s0 = inlined_call_operand.vmem [shape: bf16[16,512], index: 0, kind: input, shape index: {}]
  %s1 = inlined_call_operand.hbm [shape: bf16[512,128], index: 1, kind: input, shape index: {}]
  %s2 = inlined_call_operand.vmem [shape: f32[1,128], index: 2, kind: input, shape index: {}]
  %s3 = inlined_call_operand.vmem [shape: bf16[16,128], index: 3, kind: input, shape index: {}]
  %s4 = inlined_call_operand.vmem [shape: bf16[16,128], index: 4, kind: output, shape index: {}]
  %s5 = sld [smem:[#allocation0]]
  $region38: #{transformer_encoder_layer.9} parent=0
    _
  %s7 = ssub.s32 1, %s5
  %s8 = scalar_select 0, %s7, %s5
  $region1: #{transformer_encoder_layer.9} parent=0
    #allocation3 [shape = 'u8[131072]{0}', space=vmem, size = 0x20000, scoped, tag = 'input window, operand 1, single buffered']
    #allocation4 [shape = 's32[1]{0}', space=sflag, size = 0x4, scoped, tag = 'scoped memory for transformer_encoder_layer.9']
    %9 = vsyncpa [#allocation4], 0
    // Predicated region
    $region2: #{transformer_encoder_layer.9} parent=1 // pred_check
      _
    $region3: #{transformer_encoder_layer.9} parent=1 // pred_check_branch
      %11 = sbr.rel (0) target = $region5
    $region4: #{transformer_encoder_layer.9} parent=1 // pred_region
      _
    $region5: #{transformer_encoder_layer.9} parent=1 // pred_fallthru
      _
    // Predicated region
    $region6: #{transformer_encoder_layer.9} parent=1 // pred_check
      _
    $region7: #{transformer_encoder_layer.9} parent=1 // pred_check_branch
      %13 = sbr.rel (0) target = $region9
    $region8: #{transformer_encoder_layer.9} parent=1 // pred_region
      %15 = vsyncadd [#allocation4], 0
      %s16 = sshll.u32 %s1, 4
      %s17 = int_to_ptr.hbm [resolvable:$true] %s16
      %s18 = sshll.u32 [#allocation3], 4
      %s19 = int_to_ptr.vmem [resolvable:$true] %s18
      %24 = dma.hbm_to_vmem [thread:$0]  %s17, 4096, %s19, [#allocation4], 64, 64, 4
    $region9: #{transformer_encoder_layer.9} parent=1 // pred_fallthru
      _
    // Predicated region
    $region10: #{transformer_encoder_layer.9} parent=1 // pred_check
      _
    $region11: #{transformer_encoder_layer.9} parent=1 // pred_check_branch
      %26 = sbr.rel (0) target = $region13
    $region12: #{transformer_encoder_layer.9} parent=1 // pred_region
      _
    $region13: #{transformer_encoder_layer.9} parent=1 // pred_fallthru
      _
    // Predicated region
    $region14: #{transformer_encoder_layer.9} parent=1 // pred_check
      _
    $region15: #{transformer_encoder_layer.9} parent=1 // pred_check_branch
      %28 = sbr.rel (0) target = $region17
    $region16: #{transformer_encoder_layer.9} parent=1 // pred_region
      _
    $region17: #{transformer_encoder_layer.9} parent=1 // pred_fallthru
      _
    // Predicated region
    $region18: #{transformer_encoder_layer.9} parent=1 // pred_check
      _
    $region19: #{transformer_encoder_layer.9} parent=1 // pred_check_branch
      %30 = sbr.rel (0) target = $region21
    $region20: #{transformer_encoder_layer.9} parent=1 // pred_region
      %32 = dma.done [#allocation4], 4096
    $region21: #{transformer_encoder_layer.9} parent=1 // pred_fallthru
      _
    %p33 = scmp.eq.s32.totalorder 0, 0
    // Predicated region
    $region22: #{transformer_encoder_layer.9} parent=1 // pred_check
      %p34 = pneg %p33
    $region23: #{transformer_encoder_layer.9} parent=1 // pred_check_branch
      %36 = sbr.rel (%p34) target = $region25
    $region24: #{transformer_encoder_layer.9} parent=1 // pred_region
      %37 = vst [vmem:[#allocation2] sm:$0xff] 0.0
      %38 = vst [vmem:[#allocation2 + $0x8] sm:$0xff] 0.0
    $region25: #{transformer_encoder_layer.9} parent=1 // pred_fallthru
      _
    %v39 = vld [vmem:[#allocation2] sm:$0xff]
    %v40 = vld [vmem:[#allocation2 + $0x8] sm:$0xff]
    %v41 = vld [vmem:[%s0] sm:$0xff]
    %v42 = vld [vmem:[%s0 + $0x8] sm:$0xff]
    %v43 = vld [vmem:[%s0 + $0x10] sm:$0xff]
    %v44 = vld [vmem:[%s0 + $0x18] sm:$0xff]
    %v45 = vld [vmem:[#allocation3] sm:$0xf]
    %v46 = vld [vmem:[#allocation3 + $0x4] sm:$0xf]
    %v47 = vld [vmem:[#allocation3 + $0x8] sm:$0xf]
    %v48 = vld [vmem:[#allocation3 + $0xc] sm:$0xf]
    %v49 = vld [vmem:[#allocation3 + $0x10] sm:$0xf]
    %v50 = vld [vmem:[#allocation3 + $0x14] sm:$0xf]
    %v51 = vld [vmem:[#allocation3 + $0x18] sm:$0xf]
    %v52 = vld [vmem:[#allocation3 + $0x1c] sm:$0xf]
    %v53 = vld [vmem:[#allocation3 + $0x20] sm:$0xf]
    %v54 = vld [vmem:[#allocation3 + $0x24] sm:$0xf]
    %v55 = vld [vmem:[#allocation3 + $0x28] sm:$0xf]
    %v56 = vld [vmem:[#allocation3 + $0x2c] sm:$0xf]
    %v57 = vld [vmem:[#allocation3 + $0x30] sm:$0xf]
    %v58 = vld [vmem:[#allocation3 + $0x34] sm:$0xf]
    %v59 = vld [vmem:[#allocation3 + $0x38] sm:$0xf]
    %v60 = vld [vmem:[#allocation3 + $0x3c] sm:$0xf]
    %v61 = vld [vmem:[#allocation3 + $0x40] sm:$0xf]
    %v62 = vld [vmem:[#allocation3 + $0x44] sm:$0xf]
    %v63 = vld [vmem:[#allocation3 + $0x48] sm:$0xf]
    %v64 = vld [vmem:[#allocation3 + $0x4c] sm:$0xf]
    %v65 = vld [vmem:[#allocation3 + $0x50] sm:$0xf]
    %v66 = vld [vmem:[#allocation3 + $0x54] sm:$0xf]
    %v67 = vld [vmem:[#allocation3 + $0x58] sm:$0xf]
    %v68 = vld [vmem:[#allocation3 + $0x5c] sm:$0xf]
    %v69 = vld [vmem:[#allocation3 + $0x60] sm:$0xf]
    %v70 = vld [vmem:[#allocation3 + $0x64] sm:$0xf]
    %v71 = vld [vmem:[#allocation3 + $0x68] sm:$0xf]
    %v72 = vld [vmem:[#allocation3 + $0x6c] sm:$0xf]
    %v73 = vld [vmem:[#allocation3 + $0x70] sm:$0xf]
    %v74 = vld [vmem:[#allocation3 + $0x74] sm:$0xf]
    %v75 = vld [vmem:[#allocation3 + $0x78] sm:$0xf]
    %v76 = vld [vmem:[#allocation3 + $0x7c] sm:$0xf]
    %v77 = vld [vmem:[#allocation3 + $0x80] sm:$0xf]
    %v78 = vld [vmem:[#allocation3 + $0x84] sm:$0xf]
    %v79 = vld [vmem:[#allocation3 + $0x88] sm:$0xf]
    %v80 = vld [vmem:[#allocation3 + $0x8c] sm:$0xf]
    %v81 = vld [vmem:[#allocation3 + $0x90] sm:$0xf]
    %v82 = vld [vmem:[#allocation3 + $0x94] sm:$0xf]
    %v83 = vld [vmem:[#allocation3 + $0x98] sm:$0xf]
    %v84 = vld [vmem:[#allocation3 + $0x9c] sm:$0xf]
    %v85 = vld [vmem:[#allocation3 + $0xa0] sm:$0xf]
    %v86 = vld [vmem:[#allocation3 + $0xa4] sm:$0xf]
    %v87 = vld [vmem:[#allocation3 + $0xa8] sm:$0xf]
    %v88 = vld [vmem:[#allocation3 + $0xac] sm:$0xf]
    %v89 = vld [vmem:[#allocation3 + $0xb0] sm:$0xf]
    %v90 = vld [vmem:[#allocation3 + $0xb4] sm:$0xf]
    %v91 = vld [vmem:[#allocation3 + $0xb8] sm:$0xf]
    %v92 = vld [vmem:[#allocation3 + $0xbc] sm:$0xf]
    %v93 = vld [vmem:[#allocation3 + $0xc0] sm:$0xf]
    %v94 = vld [vmem:[#allocation3 + $0xc4] sm:$0xf]
    %v95 = vld [vmem:[#allocation3 + $0xc8] sm:$0xf]
    %v96 = vld [vmem:[#allocation3 + $0xcc] sm:$0xf]
    %v97 = vld [vmem:[#allocation3 + $0xd0] sm:$0xf]
    %v98 = vld [vmem:[#allocation3 + $0xd4] sm:$0xf]
    %v99 = vld [vmem:[#allocation3 + $0xd8] sm:$0xf]
    %v100 = vld [vmem:[#allocation3 + $0xdc] sm:$0xf]
    %v101 = vld [vmem:[#allocation3 + $0xe0] sm:$0xf]
    %v102 = vld [vmem:[#allocation3 + $0xe4] sm:$0xf]
    %v103 = vld [vmem:[#allocation3 + $0xe8] sm:$0xf]
    %v104 = vld [vmem:[#allocation3 + $0xec] sm:$0xf]
    %v105 = vld [vmem:[#allocation3 + $0xf0] sm:$0xf]
    %v106 = vld [vmem:[#allocation3 + $0xf4] sm:$0xf]
    %v107 = vld [vmem:[#allocation3 + $0xf8] sm:$0xf]
    %v108 = vld [vmem:[#allocation3 + $0xfc] sm:$0xf]
    %v113 = vunpack.c.l.b16 %v41
    %v114 = vunpack.c.h.b16 %v41
    %v115 = vunpack.c.l.b16 %v42
    %v116 = vunpack.c.h.b16 %v42
    %v117 = vunpack.c.l.b16 %v43
    %v118 = vunpack.c.h.b16 %v43
    %v119 = vunpack.c.l.b16 %v44
    %v120 = vunpack.c.h.b16 %v44
    %v121 = vpack.c.b16 %v117, %v113
    %v122 = vpack.c.b16 %v118, %v114
    %v123 = vpack.c.b16 %v119, %v115
    %v124 = vpack.c.b16 %v120, %v116
    %v193 = vunpack.c.l.b16 %v45
    %v194 = vunpack.c.l.b16 %v46
    %v195 = vunpack.c.l.b16 %v47
    %v196 = vunpack.c.l.b16 %v48
    %v197 = vunpack.c.l.b16 %v49
    %v198 = vunpack.c.l.b16 %v50
    %v199 = vunpack.c.l.b16 %v51
    %v200 = vunpack.c.l.b16 %v52
    %v201 = vunpack.c.l.b16 %v53
    %v202 = vunpack.c.l.b16 %v54
    %v203 = vunpack.c.l.b16 %v55
    %v204 = vunpack.c.l.b16 %v56
    %v205 = vunpack.c.l.b16 %v57
    %v206 = vunpack.c.l.b16 %v58
    %v207 = vunpack.c.l.b16 %v59
    %v208 = vunpack.c.l.b16 %v60
    %v209 = vunpack.c.l.b16 %v61
    %v210 = vunpack.c.l.b16 %v62
    %v211 = vunpack.c.l.b16 %v63
    %v212 = vunpack.c.l.b16 %v64
    %v213 = vunpack.c.l.b16 %v65
    %v214 = vunpack.c.l.b16 %v66
    %v215 = vunpack.c.l.b16 %v67
    %v216 = vunpack.c.l.b16 %v68
    %v217 = vunpack.c.l.b16 %v69
    %v218 = vunpack.c.l.b16 %v70
    %v219 = vunpack.c.l.b16 %v71
    %v220 = vunpack.c.l.b16 %v72
    %v221 = vunpack.c.l.b16 %v73
    %v222 = vunpack.c.l.b16 %v74
    %v223 = vunpack.c.l.b16 %v75
    %v224 = vunpack.c.l.b16 %v76
    %v225 = vunpack.c.l.b16 %v77
    %v226 = vunpack.c.l.b16 %v78
    %v227 = vunpack.c.l.b16 %v79
    %v228 = vunpack.c.l.b16 %v80
    %v229 = vunpack.c.l.b16 %v81
    %v230 = vunpack.c.l.b16 %v82
    %v231 = vunpack.c.l.b16 %v83
    %v232 = vunpack.c.l.b16 %v84
    %v233 = vunpack.c.l.b16 %v85
    %v234 = vunpack.c.l.b16 %v86
    %v235 = vunpack.c.l.b16 %v87
    %v236 = vunpack.c.l.b16 %v88
    %v237 = vunpack.c.l.b16 %v89
    %v238 = vunpack.c.l.b16 %v90
    %v239 = vunpack.c.l.b16 %v91
    %v240 = vunpack.c.l.b16 %v92
    %v241 = vunpack.c.l.b16 %v93
    %v242 = vunpack.c.l.b16 %v94
    %v243 = vunpack.c.l.b16 %v95
    %v244 = vunpack.c.l.b16 %v96
    %v245 = vunpack.c.l.b16 %v97
    %v246 = vunpack.c.l.b16 %v98
    %v247 = vunpack.c.l.b16 %v99
    %v248 = vunpack.c.l.b16 %v100
    %v249 = vunpack.c.l.b16 %v101
    %v250 = vunpack.c.l.b16 %v102
    %v251 = vunpack.c.l.b16 %v103
    %v252 = vunpack.c.l.b16 %v104
    %v253 = vunpack.c.l.b16 %v105
    %v254 = vunpack.c.l.b16 %v106
    %v255 = vunpack.c.l.b16 %v107
    %v256 = vunpack.c.l.b16 %v108
    %v257 = vpack.c.b16 %v194, %v193
    %v258 = vpack.c.b16 %v196, %v195
    %v259 = vpack.c.b16 %v198, %v197
    %v260 = vpack.c.b16 %v200, %v199
    %v261 = vpack.c.b16 %v202, %v201
    %v262 = vpack.c.b16 %v204, %v203
    %v263 = vpack.c.b16 %v206, %v205
    %v264 = vpack.c.b16 %v208, %v207
    %v265 = vpack.c.b16 %v210, %v209
    %v266 = vpack.c.b16 %v212, %v211
    %v267 = vpack.c.b16 %v214, %v213
    %v268 = vpack.c.b16 %v216, %v215
    %v269 = vpack.c.b16 %v218, %v217
    %v270 = vpack.c.b16 %v220, %v219
    %v271 = vpack.c.b16 %v222, %v221
    %v272 = vpack.c.b16 %v224, %v223
    %v273 = vpack.c.b16 %v226, %v225
    %v274 = vpack.c.b16 %v228, %v227
    %v275 = vpack.c.b16 %v230, %v229
    %v276 = vpack.c.b16 %v232, %v231
    %v277 = vpack.c.b16 %v234, %v233
    %v278 = vpack.c.b16 %v236, %v235
    %v279 = vpack.c.b16 %v238, %v237
    %v280 = vpack.c.b16 %v240, %v239
    %v281 = vpack.c.b16 %v242, %v241
    %v282 = vpack.c.b16 %v244, %v243
    %v283 = vpack.c.b16 %v246, %v245
    %v284 = vpack.c.b16 %v248, %v247
    %v285 = vpack.c.b16 %v250, %v249
    %v286 = vpack.c.b16 %v252, %v251
    %v287 = vpack.c.b16 %v254, %v253
    %v288 = vpack.c.b16 %v256, %v255
    %321 = vmatpush.bf16.msra.mxu0 %v264
    %322 = vmatpush.bf16.msra.mxu0 %v263
    %323 = vmatpush.bf16.msra.mxu0 %v262
    %324 = vmatpush.bf16.msra.mxu0 %v261
    %325 = vmatpush.bf16.msra.mxu0 %v260
    %326 = vmatpush.bf16.msra.mxu0 %v259
    %327 = vmatpush.bf16.msra.mxu0 %v258
    %328 = vmatpush.bf16.msra.mxu0 %v257
    %329 = vmatmul.bf16.gmra.mxu0 %v121
    %v330 = vpop.f32.mrf.mxu0
    %v331 = vadd.f32 0.0, %v330
    %v332 = vpop.f32.mrf.mxu0
    %v333 = vadd.f32 0.0, %v332
    %334 = vdwg.mxu0
    %335 = vmatpush.bf16.msra.mxu0 %v272
    %336 = vmatpush.bf16.msra.mxu0 %v271
    %337 = vmatpush.bf16.msra.mxu0 %v270
    %338 = vmatpush.bf16.msra.mxu0 %v269
    %339 = vmatpush.bf16.msra.mxu0 %v268
    %340 = vmatpush.bf16.msra.mxu0 %v267
    %341 = vmatpush.bf16.msra.mxu0 %v266
    %342 = vmatpush.bf16.msra.mxu0 %v265
    %343 = vmatmul.bf16.gmra.mxu0 %v122
    %v344 = vpop.f32.mrf.mxu0
    %v345 = vadd.f32 %v331, %v344
    %v346 = vpop.f32.mrf.mxu0
    %v347 = vadd.f32 %v333, %v346
    %348 = vdwg.mxu0
    %349 = vmatpush.bf16.msra.mxu0 %v280
    %350 = vmatpush.bf16.msra.mxu0 %v279
    %351 = vmatpush.bf16.msra.mxu0 %v278
    %352 = vmatpush.bf16.msra.mxu0 %v277
    %353 = vmatpush.bf16.msra.mxu0 %v276
    %354 = vmatpush.bf16.msra.mxu0 %v275
    %355 = vmatpush.bf16.msra.mxu0 %v274
    %356 = vmatpush.bf16.msra.mxu0 %v273
    %357 = vmatmul.bf16.gmra.mxu0 %v123
    %v358 = vpop.f32.mrf.mxu0
    %v359 = vadd.f32 %v345, %v358
    %v360 = vpop.f32.mrf.mxu0
    %v361 = vadd.f32 %v347, %v360
    %362 = vdwg.mxu0
    %363 = vmatpush.bf16.msra.mxu0 %v288
    %364 = vmatpush.bf16.msra.mxu0 %v287
    %365 = vmatpush.bf16.msra.mxu0 %v286
    %366 = vmatpush.bf16.msra.mxu0 %v285
    %367 = vmatpush.bf16.msra.mxu0 %v284
    %368 = vmatpush.bf16.msra.mxu0 %v283
    %369 = vmatpush.bf16.msra.mxu0 %v282
    %370 = vmatpush.bf16.msra.mxu0 %v281
    %371 = vmatmul.bf16.gmra.mxu0 %v124
    %v372 = vpop.f32.mrf.mxu0
    %v373 = vadd.f32 %v359, %v372
    %v374 = vpop.f32.mrf.mxu0
    %v375 = vadd.f32 %v361, %v374
    %376 = vdwg.mxu0
    %v377 = vadd.f32 %v39, %v373
    %v378 = vadd.f32 %v40, %v375
    %379 = vst [vmem:[#allocation2] sm:$0xff] %v377
    %380 = vst [vmem:[#allocation2 + $0x8] sm:$0xff] %v378
    // Predicated region
    $region26: #{transformer_encoder_layer.9} parent=1 // pred_check
      %p381 = pneg %p33
    $region27: #{transformer_encoder_layer.9} parent=1 // pred_check_branch
      %383 = sbr.rel (%p381) target = $region29
    $region28: #{transformer_encoder_layer.9} parent=1 // pred_region
      %v384 = vld [vmem:[#allocation2] sm:$0xff]
      %v385 = vld [vmem:[#allocation2 + $0x8] sm:$0xff]
      %v386 = vld [vmem:[%s2] sm:$0x1]
      %v388 = vperm.slane %v386, 0
      %v390 = vadd.f32 %v384, %v388
      %v391 = vadd.f32 %v385, %v388
      %v392 = vld [vmem:[%s3] sm:$0xf]
      %v393 = vld [vmem:[%s3 + $0x4] sm:$0xf]
      %v394 = vunpack.c.l.bf16 %v392
      %v395 = vunpack.c.l.bf16 %v393
      %v396 = vadd.f32 %v390, %v394
      %v397 = vadd.f32 %v391, %v395
      %v398 = vpack.c.bf16 %v396, %v396
      %v399 = vpack.c.bf16 %v397, %v397
      %400 = vst [vmem:[%s4] sm:$0xf] %v398
      %401 = vst [vmem:[%s4 + $0x4] sm:$0xf] %v399
    $region29: #{transformer_encoder_layer.9} parent=1 // pred_fallthru
      _
    // Predicated region
    $region30: #{transformer_encoder_layer.9} parent=1 // pred_check
      _
    $region31: #{transformer_encoder_layer.9} parent=1 // pred_check_branch
      %403 = sbr.rel (0) target = $region33
    $region32: #{transformer_encoder_layer.9} parent=1 // pred_region
      _
    $region33: #{transformer_encoder_layer.9} parent=1 // pred_fallthru
      _
    // Predicated region
    $region34: #{transformer_encoder_layer.9} parent=1 // pred_check
      _
    $region35: #{transformer_encoder_layer.9} parent=1 // pred_check_branch
      %405 = sbr.rel (0) target = $region37
    $region36: #{transformer_encoder_layer.9} parent=1 // pred_region
      _
    $region37: #{transformer_encoder_layer.9} parent=1 // pred_fallthru
      _
    %406 = vsyncpa [#allocation4], 1

// kernel: transformer_encoder_layer.7
$region0: #{transformer_encoder_layer.7}
  #allocation0 [shape = 'u32[]', space=smem, size = 0x4, offset = 0x4, fixed_abs, tag = 'smem constant byte address 0x4 - core index']
  #allocation1 [shape = 'u32[72,128]{1,0:T(1,128)}', space=vmem, size = 0x9000, scoped, tag = 'internal scratch']
  #allocation2 [shape = 'f32[16,768]{1,0:T(8,128)}', space=vmem, size = 0xc000, scoped, tag = 'scratch operand']
  %s0 = inlined_call_operand.vmem [shape: bf16[16,128], index: 0, kind: input, shape index: {}]
  %s1 = inlined_call_operand.hbm [shape: bf16[128,1536], index: 1, kind: input, shape index: {}]
  %s2 = inlined_call_operand.vmem [shape: f32[1,1536], index: 2, kind: input, shape index: {}]
  %s3 = inlined_call_operand.vmem [shape: bf16[16,1536], index: 3, kind: output, shape index: {}]
  %s4 = sld [smem:[#allocation0]]
  $region76: #{transformer_encoder_layer.7} parent=0
    _
  %s6 = ssub.s32 1, %s4
  %s7 = scalar_select 0, %s6, %s4
  $region1: #{transformer_encoder_layer.7} parent=0
    #allocation3 [shape = 'u8[393216]{0}', space=vmem, size = 0x60000, scoped, tag = 'input window, operand 1']
    #allocation4 [shape = 's32[2]{0}', space=sflag, size = 0x8, scoped, tag = 'scoped memory for transformer_encoder_layer.7']
    #allocation5 [shape = 'u8[49152]{0}', space=vmem, size = 0xc000, scoped, tag = 'output window, operand 0']
    %8 = vsyncpa [#allocation4], 0
    %s9 = scalar_lea.sflag [#allocation4], 1
    %10 = vsyncpa %s9, 0
    loop: start=0, step=1, limit=4
    $region2: #{transformer_encoder_layer.7} parent=1 // loop_pre_header
      _
    $region3: #{transformer_encoder_layer.7} parent=1 // loop_header
      %s12 = sphi 0, %s16
      %p13 = scmp.ge.s32.totalorder %s12, 4
      %s19 = sphi 0, %s38
      %s20 = sphi 0, %s34
      %s21 = sphi 0, %s30
      %s22 = sphi 0, %s19
      %s23 = sphi 0, %s20
      %s24 = sphi 0, %s21
      %s25 = sphi 0, %s22
      %s26 = sphi 0, %s23
      %s27 = sphi 0, %s24
      %s43 = sphi 0, %s45
      %s46 = sphi 0, %s43
      %s47 = sphi 0, %s46
      %s63 = sphi 0, %s47
      %s71 = sphi 0, %s73
      %s74 = sphi 0, %s71
      %s75 = sphi 0, %s74
      %s91 = sphi 0, %s75
      %s97 = sphi 0, %s99
      %s100 = sphi 0, %s97
      %s101 = sphi 0, %s100
      %s117 = sphi 0, %s101
      %s125 = sphi 0, %s127
      %s128 = sphi 0, %s125
      %s129 = sphi 0, %s128
      %s145 = sphi 0, %s129
    $region4: #{transformer_encoder_layer.7} parent=1 // loop_header_branch
      %15 = sbr.rel (%p13) target = $region8
    $region5: #{transformer_encoder_layer.7} parent=1 // loop_body
      %s17 = ssub.s32 %s12, 1
      %s18 = ssub.s32 %s12, 2
      %s28 = sadd.s32 1, %s21
      %p29 = scmp.ge.s32.totalorder %s28, 1
      %s30 = scalar_select %p29, 0, %s28
      %s31 = sadd.s32 1, %s20
      %s32 = scalar_select %p29, %s31, %s20
      %p33 = scmp.ge.s32.totalorder %s32, 2
      %s34 = scalar_select %p33, 0, %s32
      %s35 = sadd.s32 1, %s19
      %s36 = scalar_select %p33, %s35, %s19
      %p37 = scmp.ge.s32.totalorder %s36, 1
      %s38 = scalar_select %p37, 0, %s36
      %s39 = ssub.s32 %s19, %s38
      %s40 = ssub.s32 %s21, %s30
      %s41 = sor.u32 %s39, %s40
      %p42 = scmp.eq.s32.totalorder %s41, 0
      %s44 = sadd.s32 %s43, 1
      %s45 = scalar_select %p42, %s43, %s44
      %p48 = pneg %p42
      %p49 = scmp.eq.s32.totalorder %s12, 1
      %p50 = por %p48, %p49
      %p51 = scmp.ne.s32.totalorder %s43, %s46
      %p52 = scmp.eq.s32.totalorder %s12, 0
      %p53 = por %p51, %p52
      %p54 = scmp.ne.s32.totalorder %s43, %s46
      %p55 = scmp.eq.s32.totalorder %s17, 1
      %p56 = por %p54, %p55
      %p57 = scmp.ne.s32.totalorder %s46, %s47
      %p58 = scmp.eq.s32.totalorder %s17, 0
      %p59 = por %p57, %p58
      %p60 = scmp.ne.s32.totalorder %s46, %s47
      %p61 = scmp.eq.s32.totalorder %s18, 1
      %p62 = por %p60, %p61
      %p64 = scmp.ne.s32.totalorder %s47, %s63
      %p65 = scmp.eq.s32.totalorder %s18, 0
      %p66 = por %p64, %p65
      %s67 = ssub.s32 %s21, %s30
      %s68 = ssub.s32 %s20, %s34
      %s69 = sor.u32 %s67, %s68
      %p70 = scmp.eq.s32.totalorder %s69, 0
      %s72 = sadd.s32 %s71, 1
      %s73 = scalar_select %p70, %s71, %s72
      %p76 = pneg %p70
      %p77 = scmp.eq.s32.totalorder %s12, 1
      %p78 = por %p76, %p77
      %p79 = scmp.ne.s32.totalorder %s71, %s74
      %p80 = scmp.eq.s32.totalorder %s12, 0
      %p81 = por %p79, %p80
      %p82 = scmp.ne.s32.totalorder %s71, %s74
      %p83 = scmp.eq.s32.totalorder %s17, 1
      %p84 = por %p82, %p83
      %p85 = scmp.ne.s32.totalorder %s74, %s75
      %p86 = scmp.eq.s32.totalorder %s17, 0
      %p87 = por %p85, %p86
      %p88 = scmp.ne.s32.totalorder %s74, %s75
      %p89 = scmp.eq.s32.totalorder %s18, 1
      %p90 = por %p88, %p89
      %p92 = scmp.ne.s32.totalorder %s75, %s91
      %p93 = scmp.eq.s32.totalorder %s18, 0
      %p94 = por %p92, %p93
      %s95 = ssub.s32 %s20, %s34
      %p96 = scmp.eq.s32.totalorder %s95, 0
      %s98 = sadd.s32 %s97, 1
      %s99 = scalar_select %p96, %s97, %s98
      %p102 = pneg %p96
      %p103 = scmp.eq.s32.totalorder %s12, 1
      %p104 = por %p102, %p103
      %p105 = scmp.ne.s32.totalorder %s97, %s100
      %p106 = scmp.eq.s32.totalorder %s12, 0
      %p107 = por %p105, %p106
      %p108 = scmp.ne.s32.totalorder %s97, %s100
      %p109 = scmp.eq.s32.totalorder %s17, 1
      %p110 = por %p108, %p109
      %p111 = scmp.ne.s32.totalorder %s100, %s101
      %p112 = scmp.eq.s32.totalorder %s17, 0
      %p113 = por %p111, %p112
      %p114 = scmp.ne.s32.totalorder %s100, %s101
      %p115 = scmp.eq.s32.totalorder %s18, 1
      %p116 = por %p114, %p115
      %p118 = scmp.ne.s32.totalorder %s101, %s117
      %p119 = scmp.eq.s32.totalorder %s18, 0
      %p120 = por %p118, %p119
      %s121 = ssub.s32 %s19, %s38
      %s122 = ssub.s32 %s20, %s34
      %s123 = sor.u32 %s121, %s122
      %p124 = scmp.eq.s32.totalorder %s123, 0
      %s126 = sadd.s32 %s125, 1
      %s127 = scalar_select %p124, %s125, %s126
      %p130 = pneg %p124
      %p131 = scmp.eq.s32.totalorder %s12, 1
      %p132 = por %p130, %p131
      %p133 = scmp.ne.s32.totalorder %s125, %s128
      %p134 = scmp.eq.s32.totalorder %s12, 0
      %p135 = por %p133, %p134
      %p136 = scmp.ne.s32.totalorder %s125, %s128
      %p137 = scmp.eq.s32.totalorder %s17, 1
      %p138 = por %p136, %p137
      %p139 = scmp.ne.s32.totalorder %s128, %s129
      %p140 = scmp.eq.s32.totalorder %s17, 0
      %p141 = por %p139, %p140
      %p142 = scmp.ne.s32.totalorder %s128, %s129
      %p143 = scmp.eq.s32.totalorder %s18, 1
      %p144 = por %p142, %p143
      %p146 = scmp.ne.s32.totalorder %s129, %s145
      %p147 = scmp.eq.s32.totalorder %s18, 0
      %p148 = por %p146, %p147
      %p149 = scmp.le.s32.totalorder 1, %s12
      %p150 = scmp.lt.s32.totalorder %s12, 3
      %p151 = pnand %p149, %p150
      %p152 = pneg %p151
      // Predicated region
      $region9: #{transformer_encoder_layer.7} parent=5 // pred_check
        _
      $region10: #{transformer_encoder_layer.7} parent=5 // pred_check_branch
        %154 = sbr.rel (%p151) target = $region12
      $region11: #{transformer_encoder_layer.7} parent=5 // pred_region
        %s155 = ssub.s32 %s12, 1
        // Predicated region
        $region13: #{transformer_encoder_layer.7} parent=11 // pred_check
          %p156 = pneg %p59
        $region14: #{transformer_encoder_layer.7} parent=11 // pred_check_branch
          %158 = sbr.rel (%p156) target = $region16
        $region15: #{transformer_encoder_layer.7} parent=11 // pred_region
          %s159 = smul.u32 2, %s22
          %p160 = scmp.lt.s32.totalorder %s159, 1
          %s161 = scalar_select %p160, %s159, 1
          %p162 = scmp.lt.s32.totalorder %s24, 0
          %s163 = scalar_select %p162, %s24, 0
          %s164 = sadd.s32 %s163, %s161
          %s165 = smul.addr %s164, 4
          %s166 = scalar_lea.vmem %s0, %s165
          %s167 = smul.u32 2, %s22
        $region16: #{transformer_encoder_layer.7} parent=11 // pred_fallthru
          _
      $region12: #{transformer_encoder_layer.7} parent=5 // pred_fallthru
        _
      %p168 = scmp.lt.s32.totalorder %s12, 2
      // Predicated region
      $region17: #{transformer_encoder_layer.7} parent=5 // pred_check
        %p169 = pneg %p168
      $region18: #{transformer_encoder_layer.7} parent=5 // pred_check_branch
        %171 = sbr.rel (%p169) target = $region20
      $region19: #{transformer_encoder_layer.7} parent=5 // pred_region
        // Predicated region
        $region21: #{transformer_encoder_layer.7} parent=19 // pred_check
          %p172 = pneg %p81
        $region22: #{transformer_encoder_layer.7} parent=19 // pred_check_branch
          %174 = sbr.rel (%p172) target = $region24
        $region23: #{transformer_encoder_layer.7} parent=19 // pred_region
          %s175 = sand.u32 %s71, 1
          %s176 = scalar_lea.sflag [#allocation4], %s175
          %s177 = sand.u32 %s71, 1
          %s178 = smul.addr %s177, 384
          %s179 = scalar_lea.vmem [#allocation3], %s178
          %s180 = smul.u32 16, %s21
          %s181 = smul.u32 6, %s20
          %183 = vsyncadd %s176, 0
          %s184 = smul.addr %s180, 12
          %s185 = sadd.s32 %s181, %s184
          %s186 = smul.addr %s185, 4
          %s187 = scalar_lea.hbm %s1, %s186
          %s188 = sshll.u32 %s187, 4
          %s189 = int_to_ptr.hbm [resolvable:$true] %s188
          %s190 = sshll.u32 %s179, 4
          %s191 = int_to_ptr.vmem [resolvable:$true] %s190
          %196 = dma.hbm_to_vmem [thread:$0]  %s189, 6144, %s191, %s176, 768, 384, 24
        $region24: #{transformer_encoder_layer.7} parent=19 // pred_fallthru
          _
        // Predicated region
        $region25: #{transformer_encoder_layer.7} parent=19 // pred_check
          %p197 = pneg %p107
        $region26: #{transformer_encoder_layer.7} parent=19 // pred_check_branch
          %199 = sbr.rel (%p197) target = $region28
        $region27: #{transformer_encoder_layer.7} parent=19 // pred_region
          %s200 = smul.u32 6, %s20
          %p201 = scmp.lt.s32.totalorder %s200, 11
          %s202 = scalar_select %p201, %s200, 11
          %s203 = scalar_lea.vmem %s2, %s202
          %s204 = smul.u32 6, %s20
        $region28: #{transformer_encoder_layer.7} parent=19 // pred_fallthru
          _
      $region20: #{transformer_encoder_layer.7} parent=5 // pred_fallthru
        _
      %p205 = scmp.le.s32.totalorder 1, %s12
      %p206 = scmp.lt.s32.totalorder %s12, 3
      %p207 = pnand %p205, %p206
      %p208 = pneg %p207
      // Predicated region
      $region29: #{transformer_encoder_layer.7} parent=5 // pred_check
        _
      $region30: #{transformer_encoder_layer.7} parent=5 // pred_check_branch
        %210 = sbr.rel (%p207) target = $region32
      $region31: #{transformer_encoder_layer.7} parent=5 // pred_region
        %s211 = ssub.s32 %s12, 1
        %s212 = sand.u32 %s74, 1
        %s213 = scalar_lea.sflag [#allocation4], %s212
        %s214 = sand.u32 %s74, 1
        %s215 = smul.addr %s214, 384
        %s216 = scalar_lea.vmem [#allocation3], %s215
        // Predicated region
        $region33: #{transformer_encoder_layer.7} parent=31 // pred_check
          %p217 = pneg %p87
        $region34: #{transformer_encoder_layer.7} parent=31 // pred_check_branch
          %219 = sbr.rel (%p217) target = $region36
        $region35: #{transformer_encoder_layer.7} parent=31 // pred_region
          %221 = dma.done %s213, 6144
        $region36: #{transformer_encoder_layer.7} parent=31 // pred_fallthru
          _
        %s222 = smul.u32 2, %s22
        %p223 = scmp.lt.s32.totalorder %s222, 1
        %s224 = scalar_select %p223, %s222, 1
        %p225 = scmp.lt.s32.totalorder %s24, 0
        %s226 = scalar_select %p225, %s24, 0
        %s227 = sadd.s32 %s226, %s224
        %s228 = smul.addr %s227, 4
        %s229 = scalar_lea.vmem %s0, %s228
        %p230 = pneg %p59
        %p231 = pneg %p56
        %s232 = sand.u32 %s74, 1
        %s233 = scalar_lea.sflag [#allocation4], %s232
        %s234 = sand.u32 %s74, 1
        %s235 = smul.addr %s234, 384
        %s236 = scalar_lea.vmem [#allocation3], %s235
        %p237 = pneg %p87
        %p238 = pneg %p84
        %s239 = smul.u32 6, %s23
        %p240 = scmp.lt.s32.totalorder %s239, 11
        %s241 = scalar_select %p240, %s239, 11
        %s242 = scalar_lea.vmem %s2, %s241
        %p243 = pneg %p113
        %p244 = pneg %p110
        %p245 = pneg %p141
        %p246 = pneg %p138
        %s247 = sand.u32 %s128, 1
        %s248 = sand.u32 %s128, 1
        %s249 = smul.addr %s248, 48
        %s250 = scalar_lea.vmem [#allocation5], %s249
        %s251 = smul.u32 2, %s22
        %p252 = scmp.lt.s32.totalorder %s251, 1
        %s253 = scalar_select %p252, %s251, 1
        %p254 = scmp.lt.s32.totalorder %s24, 0
        %s255 = scalar_select %p254, %s24, 0
        %s256 = sadd.s32 %s255, %s253
        %s257 = smul.addr %s256, 4
        %s258 = scalar_lea.vmem %s0, %s257
        %s259 = smul.u32 2, %s22
        %s260 = smul.u32 16, %s24
        %s261 = smul.u32 6, %s23
        %s262 = smul.u32 6, %s23
        %p263 = scmp.lt.s32.totalorder %s262, 11
        %s264 = scalar_select %p263, %s262, 11
        %s265 = scalar_lea.vmem %s2, %s264
        %s266 = smul.u32 6, %s23
        %s267 = smul.u32 2, %s22
        %s268 = smul.u32 6, %s23
        %p269 = scmp.eq.s32.totalorder %s24, 0
        // Predicated region
        $region37: #{transformer_encoder_layer.7} parent=31 // pred_check
          %p270 = pneg %p269
        $region38: #{transformer_encoder_layer.7} parent=31 // pred_check_branch
          %272 = sbr.rel (%p270) target = $region40
        $region39: #{transformer_encoder_layer.7} parent=31 // pred_region
          %273 = vst [vmem:[#allocation2] sm:$0xff] 0.0
          %274 = vst [vmem:[#allocation2 + $0x8] sm:$0xff] 0.0
          %275 = vst [vmem:[#allocation2 + $0x10] sm:$0xff] 0.0
          %276 = vst [vmem:[#allocation2 + $0x18] sm:$0xff] 0.0
          %277 = vst [vmem:[#allocation2 + $0x20] sm:$0xff] 0.0
          %278 = vst [vmem:[#allocation2 + $0x28] sm:$0xff] 0.0
          %279 = vst [vmem:[#allocation2 + $0x30] sm:$0xff] 0.0
          %280 = vst [vmem:[#allocation2 + $0x38] sm:$0xff] 0.0
          %281 = vst [vmem:[#allocation2 + $0x40] sm:$0xff] 0.0
          %282 = vst [vmem:[#allocation2 + $0x48] sm:$0xff] 0.0
          %283 = vst [vmem:[#allocation2 + $0x50] sm:$0xff] 0.0
          %284 = vst [vmem:[#allocation2 + $0x58] sm:$0xff] 0.0
        $region40: #{transformer_encoder_layer.7} parent=31 // pred_fallthru
          _
        %v285 = vld [vmem:[#allocation2] sm:$0xff]
        %v286 = vld [vmem:[#allocation2 + $0x8] sm:$0xff]
        %v287 = vld [vmem:[#allocation2 + $0x10] sm:$0xff]
        %v288 = vld [vmem:[#allocation2 + $0x18] sm:$0xff]
        %v289 = vld [vmem:[#allocation2 + $0x20] sm:$0xff]
        %v290 = vld [vmem:[#allocation2 + $0x28] sm:$0xff]
        %v291 = vld [vmem:[#allocation2 + $0x30] sm:$0xff]
        %v292 = vld [vmem:[#allocation2 + $0x38] sm:$0xff]
        %v293 = vld [vmem:[#allocation2 + $0x40] sm:$0xff]
        %v294 = vld [vmem:[#allocation2 + $0x48] sm:$0xff]
        %v295 = vld [vmem:[#allocation2 + $0x50] sm:$0xff]
        %v296 = vld [vmem:[#allocation2 + $0x58] sm:$0xff]
        %v297 = vld [vmem:[%s258] sm:$0xf]
        %v298 = vld [vmem:[%s258 + $0x4] sm:$0xf]
        %v299 = vld [vmem:[%s216] sm:$0xff]
        %v300 = vld [vmem:[%s216 + $0x8] sm:$0xff]
        %v301 = vld [vmem:[%s216 + $0x10] sm:$0xff]
        %v302 = vld [vmem:[%s216 + $0x18] sm:$0xff]
        %v303 = vld [vmem:[%s216 + $0x20] sm:$0xff]
        %v304 = vld [vmem:[%s216 + $0x28] sm:$0xff]
        %v305 = vld [vmem:[%s216 + $0x30] sm:$0xff]
        %v306 = vld [vmem:[%s216 + $0x38] sm:$0xff]
        %v307 = vld [vmem:[%s216 + $0x40] sm:$0xff]
        %v308 = vld [vmem:[%s216 + $0x48] sm:$0xff]
        %v309 = vld [vmem:[%s216 + $0x50] sm:$0xff]
        %v310 = vld [vmem:[%s216 + $0x58] sm:$0xff]
        %v311 = vld [vmem:[%s216 + $0x60] sm:$0xff]
        %v312 = vld [vmem:[%s216 + $0x68] sm:$0xff]
        %v313 = vld [vmem:[%s216 + $0x70] sm:$0xff]
        %v314 = vld [vmem:[%s216 + $0x78] sm:$0xff]
        %v315 = vld [vmem:[%s216 + $0x80] sm:$0xff]
        %v316 = vld [vmem:[%s216 + $0x88] sm:$0xff]
        %v317 = vld [vmem:[%s216 + $0x90] sm:$0xff]
        %v318 = vld [vmem:[%s216 + $0x98] sm:$0xff]
        %v319 = vld [vmem:[%s216 + $0xa0] sm:$0xff]
        %v320 = vld [vmem:[%s216 + $0xa8] sm:$0xff]
        %v321 = vld [vmem:[%s216 + $0xb0] sm:$0xff]
        %v322 = vld [vmem:[%s216 + $0xb8] sm:$0xff]
        %v323 = vld [vmem:[%s216 + $0xc0] sm:$0xff]
        %v324 = vld [vmem:[%s216 + $0xc8] sm:$0xff]
        %v325 = vld [vmem:[%s216 + $0xd0] sm:$0xff]
        %v326 = vld [vmem:[%s216 + $0xd8] sm:$0xff]
        %v327 = vld [vmem:[%s216 + $0xe0] sm:$0xff]
        %v328 = vld [vmem:[%s216 + $0xe8] sm:$0xff]
        %v329 = vld [vmem:[%s216 + $0xf0] sm:$0xff]
        %v330 = vld [vmem:[%s216 + $0xf8] sm:$0xff]
        %v331 = vld [vmem:[%s216 + $0x100] sm:$0xff]
        %v332 = vld [vmem:[%s216 + $0x108] sm:$0xff]
        %v333 = vld [vmem:[%s216 + $0x110] sm:$0xff]
        %v334 = vld [vmem:[%s216 + $0x118] sm:$0xff]
        %v335 = vld [vmem:[%s216 + $0x120] sm:$0xff]
        %v336 = vld [vmem:[%s216 + $0x128] sm:$0xff]
        %v337 = vld [vmem:[%s216 + $0x130] sm:$0xff]
        %v338 = vld [vmem:[%s216 + $0x138] sm:$0xff]
        %v339 = vld [vmem:[%s216 + $0x140] sm:$0xff]
        %v340 = vld [vmem:[%s216 + $0x148] sm:$0xff]
        %v341 = vld [vmem:[%s216 + $0x150] sm:$0xff]
        %v342 = vld [vmem:[%s216 + $0x158] sm:$0xff]
        %v343 = vld [vmem:[%s216 + $0x160] sm:$0xff]
        %v344 = vld [vmem:[%s216 + $0x168] sm:$0xff]
        %v345 = vld [vmem:[%s216 + $0x170] sm:$0xff]
        %v346 = vld [vmem:[%s216 + $0x178] sm:$0xff]
        %v349 = vunpack.c.l.b16 %v297
        %v350 = vunpack.c.l.b16 %v298
        %v351 = vpack.c.b16 %v350, %v349
        %v401 = vunpack.c.l.b16 %v299
        %v402 = vunpack.c.h.b16 %v299
        %v403 = vunpack.c.l.b16 %v300
        %v404 = vunpack.c.h.b16 %v300
        %v405 = vunpack.c.l.b16 %v301
        %v406 = vunpack.c.h.b16 %v301
        %v407 = vunpack.c.l.b16 %v302
        %v408 = vunpack.c.h.b16 %v302
        %v409 = vunpack.c.l.b16 %v303
        %v410 = vunpack.c.h.b16 %v303
        %v411 = vunpack.c.l.b16 %v304
        %v412 = vunpack.c.h.b16 %v304
        %v413 = vunpack.c.l.b16 %v305
        %v414 = vunpack.c.h.b16 %v305
        %v415 = vunpack.c.l.b16 %v306
        %v416 = vunpack.c.h.b16 %v306
        %v417 = vunpack.c.l.b16 %v307
        %v418 = vunpack.c.h.b16 %v307
        %v419 = vunpack.c.l.b16 %v308
        %v420 = vunpack.c.h.b16 %v308
        %v421 = vunpack.c.l.b16 %v309
        %v422 = vunpack.c.h.b16 %v309
        %v423 = vunpack.c.l.b16 %v310
        %v424 = vunpack.c.h.b16 %v310
        %v425 = vunpack.c.l.b16 %v311
        %v426 = vunpack.c.h.b16 %v311
        %v427 = vunpack.c.l.b16 %v312
        %v428 = vunpack.c.h.b16 %v312
        %v429 = vunpack.c.l.b16 %v313
        %v430 = vunpack.c.h.b16 %v313
        %v431 = vunpack.c.l.b16 %v314
        %v432 = vunpack.c.h.b16 %v314
        %v433 = vunpack.c.l.b16 %v315
        %v434 = vunpack.c.h.b16 %v315
        %v435 = vunpack.c.l.b16 %v316
        %v436 = vunpack.c.h.b16 %v316
        %v437 = vunpack.c.l.b16 %v317
        %v438 = vunpack.c.h.b16 %v317
        %v439 = vunpack.c.l.b16 %v318
        %v440 = vunpack.c.h.b16 %v318
        %v441 = vunpack.c.l.b16 %v319
        %v442 = vunpack.c.h.b16 %v319
        %v443 = vunpack.c.l.b16 %v320
        %v444 = vunpack.c.h.b16 %v320
        %v445 = vunpack.c.l.b16 %v321
        %v446 = vunpack.c.h.b16 %v321
        %v447 = vunpack.c.l.b16 %v322
        %v448 = vunpack.c.h.b16 %v322
        %v449 = vunpack.c.l.b16 %v323
        %v450 = vunpack.c.h.b16 %v323
        %v451 = vunpack.c.l.b16 %v324
        %v452 = vunpack.c.h.b16 %v324
        %v453 = vunpack.c.l.b16 %v325
        %v454 = vunpack.c.h.b16 %v325
        %v455 = vunpack.c.l.b16 %v326
        %v456 = vunpack.c.h.b16 %v326
        %v457 = vunpack.c.l.b16 %v327
        %v458 = vunpack.c.h.b16 %v327
        %v459 = vunpack.c.l.b16 %v328
        %v460 = vunpack.c.h.b16 %v328
        %v461 = vunpack.c.l.b16 %v329
        %v462 = vunpack.c.h.b16 %v329
        %v463 = vunpack.c.l.b16 %v330
        %v464 = vunpack.c.h.b16 %v330
        %v465 = vunpack.c.l.b16 %v331
        %v466 = vunpack.c.h.b16 %v331
        %v467 = vunpack.c.l.b16 %v332
        %v468 = vunpack.c.h.b16 %v332
        %v469 = vunpack.c.l.b16 %v333
        %v470 = vunpack.c.h.b16 %v333
        %v471 = vunpack.c.l.b16 %v334
        %v472 = vunpack.c.h.b16 %v334
        %v473 = vunpack.c.l.b16 %v335
        %v474 = vunpack.c.h.b16 %v335
        %v475 = vunpack.c.l.b16 %v336
        %v476 = vunpack.c.h.b16 %v336
        %v477 = vunpack.c.l.b16 %v337
        %v478 = vunpack.c.h.b16 %v337
        %v479 = vunpack.c.l.b16 %v338
        %v480 = vunpack.c.h.b16 %v338
        %v481 = vunpack.c.l.b16 %v339
        %v482 = vunpack.c.h.b16 %v339
        %v483 = vunpack.c.l.b16 %v340
        %v484 = vunpack.c.h.b16 %v340
        %v485 = vunpack.c.l.b16 %v341
        %v486 = vunpack.c.h.b16 %v341
        %v487 = vunpack.c.l.b16 %v342
        %v488 = vunpack.c.h.b16 %v342
        %v489 = vunpack.c.l.b16 %v343
        %v490 = vunpack.c.h.b16 %v343
        %v491 = vunpack.c.l.b16 %v344
        %v492 = vunpack.c.h.b16 %v344
        %v493 = vunpack.c.l.b16 %v345
        %v494 = vunpack.c.h.b16 %v345
        %v495 = vunpack.c.l.b16 %v346
        %v496 = vunpack.c.h.b16 %v346
        %v497 = vpack.c.b16 %v407, %v401
        %v498 = vpack.c.b16 %v408, %v402
        %v499 = vpack.c.b16 %v409, %v403
        %v500 = vpack.c.b16 %v410, %v404
        %v501 = vpack.c.b16 %v411, %v405
        %v502 = vpack.c.b16 %v412, %v406
        %v503 = vpack.c.b16 %v419, %v413
        %v504 = vpack.c.b16 %v420, %v414
        %v505 = vpack.c.b16 %v421, %v415
        %v506 = vpack.c.b16 %v422, %v416
        %v507 = vpack.c.b16 %v423, %v417
        %v508 = vpack.c.b16 %v424, %v418
        %v509 = vpack.c.b16 %v431, %v425
        %v510 = vpack.c.b16 %v432, %v426
        %v511 = vpack.c.b16 %v433, %v427
        %v512 = vpack.c.b16 %v434, %v428
        %v513 = vpack.c.b16 %v435, %v429
        %v514 = vpack.c.b16 %v436, %v430
        %v515 = vpack.c.b16 %v443, %v437
        %v516 = vpack.c.b16 %v444, %v438
        %v517 = vpack.c.b16 %v445, %v439
        %v518 = vpack.c.b16 %v446, %v440
        %v519 = vpack.c.b16 %v447, %v441
        %v520 = vpack.c.b16 %v448, %v442
        %v521 = vpack.c.b16 %v455, %v449
        %v522 = vpack.c.b16 %v456, %v450
        %v523 = vpack.c.b16 %v457, %v451
        %v524 = vpack.c.b16 %v458, %v452
        %v525 = vpack.c.b16 %v459, %v453
        %v526 = vpack.c.b16 %v460, %v454
        %v527 = vpack.c.b16 %v467, %v461
        %v528 = vpack.c.b16 %v468, %v462
        %v529 = vpack.c.b16 %v469, %v463
        %v530 = vpack.c.b16 %v470, %v464
        %v531 = vpack.c.b16 %v471, %v465
        %v532 = vpack.c.b16 %v472, %v466
        %v533 = vpack.c.b16 %v479, %v473
        %v534 = vpack.c.b16 %v480, %v474
        %v535 = vpack.c.b16 %v481, %v475
        %v536 = vpack.c.b16 %v482, %v476
        %v537 = vpack.c.b16 %v483, %v477
        %v538 = vpack.c.b16 %v484, %v478
        %v539 = vpack.c.b16 %v491, %v485
        %v540 = vpack.c.b16 %v492, %v486
        %v541 = vpack.c.b16 %v493, %v487
        %v542 = vpack.c.b16 %v494, %v488
        %v543 = vpack.c.b16 %v495, %v489
        %v544 = vpack.c.b16 %v496, %v490
        %593 = vmatpush.bf16.msra.mxu0 %v539
        %594 = vmatpush.bf16.msra.mxu0 %v533
        %595 = vmatpush.bf16.msra.mxu0 %v527
        %596 = vmatpush.bf16.msra.mxu0 %v521
        %597 = vmatpush.bf16.msra.mxu0 %v515
        %598 = vmatpush.bf16.msra.mxu0 %v509
        %599 = vmatpush.bf16.msra.mxu0 %v503
        %600 = vmatpush.bf16.msra.mxu0 %v497
        %601 = vmatmul.bf16.gmra.mxu0 %v351
        %v602 = vpop.f32.mrf.mxu0
        %v603 = vadd.f32 0.0, %v602
        %v604 = vpop.f32.mrf.mxu0
        %v605 = vadd.f32 0.0, %v604
        %606 = vdwg.mxu0
        %607 = vmatpush.bf16.msra.mxu0 %v540
        %608 = vmatpush.bf16.msra.mxu0 %v534
        %609 = vmatpush.bf16.msra.mxu0 %v528
        %610 = vmatpush.bf16.msra.mxu0 %v522
        %611 = vmatpush.bf16.msra.mxu0 %v516
        %612 = vmatpush.bf16.msra.mxu0 %v510
        %613 = vmatpush.bf16.msra.mxu0 %v504
        %614 = vmatpush.bf16.msra.mxu0 %v498
        %615 = vmatmul.bf16.gmra.mxu0 %v351
        %v616 = vpop.f32.mrf.mxu0
        %v617 = vadd.f32 0.0, %v616
        %v618 = vpop.f32.mrf.mxu0
        %v619 = vadd.f32 0.0, %v618
        %620 = vdwg.mxu0
        %621 = vmatpush.bf16.msra.mxu0 %v541
        %622 = vmatpush.bf16.msra.mxu0 %v535
        %623 = vmatpush.bf16.msra.mxu0 %v529
        %624 = vmatpush.bf16.msra.mxu0 %v523
        %625 = vmatpush.bf16.msra.mxu0 %v517
        %626 = vmatpush.bf16.msra.mxu0 %v511
        %627 = vmatpush.bf16.msra.mxu0 %v505
        %628 = vmatpush.bf16.msra.mxu0 %v499
        %629 = vmatmul.bf16.gmra.mxu0 %v351
        %v630 = vpop.f32.mrf.mxu0
        %v631 = vadd.f32 0.0, %v630
        %v632 = vpop.f32.mrf.mxu0
        %v633 = vadd.f32 0.0, %v632
        %634 = vdwg.mxu0
        %635 = vmatpush.bf16.msra.mxu0 %v542
        %636 = vmatpush.bf16.msra.mxu0 %v536
        %637 = vmatpush.bf16.msra.mxu0 %v530
        %638 = vmatpush.bf16.msra.mxu0 %v524
        %639 = vmatpush.bf16.msra.mxu0 %v518
        %640 = vmatpush.bf16.msra.mxu0 %v512
        %641 = vmatpush.bf16.msra.mxu0 %v506
        %642 = vmatpush.bf16.msra.mxu0 %v500
        %643 = vmatmul.bf16.gmra.mxu0 %v351
        %v644 = vpop.f32.mrf.mxu0
        %v645 = vadd.f32 0.0, %v644
        %v646 = vpop.f32.mrf.mxu0
        %v647 = vadd.f32 0.0, %v646
        %648 = vdwg.mxu0
        %649 = vmatpush.bf16.msra.mxu0 %v543
        %650 = vmatpush.bf16.msra.mxu0 %v537
        %651 = vmatpush.bf16.msra.mxu0 %v531
        %652 = vmatpush.bf16.msra.mxu0 %v525
        %653 = vmatpush.bf16.msra.mxu0 %v519
        %654 = vmatpush.bf16.msra.mxu0 %v513
        %655 = vmatpush.bf16.msra.mxu0 %v507
        %656 = vmatpush.bf16.msra.mxu0 %v501
        %657 = vmatmul.bf16.gmra.mxu0 %v351
        %v658 = vpop.f32.mrf.mxu0
        %v659 = vadd.f32 0.0, %v658
        %v660 = vpop.f32.mrf.mxu0
        %v661 = vadd.f32 0.0, %v660
        %662 = vdwg.mxu0
        %663 = vmatpush.bf16.msra.mxu0 %v544
        %664 = vmatpush.bf16.msra.mxu0 %v538
        %665 = vmatpush.bf16.msra.mxu0 %v532
        %666 = vmatpush.bf16.msra.mxu0 %v526
        %667 = vmatpush.bf16.msra.mxu0 %v520
        %668 = vmatpush.bf16.msra.mxu0 %v514
        %669 = vmatpush.bf16.msra.mxu0 %v508
        %670 = vmatpush.bf16.msra.mxu0 %v502
        %671 = vmatmul.bf16.gmra.mxu0 %v351
        %v672 = vpop.f32.mrf.mxu0
        %v673 = vadd.f32 0.0, %v672
        %v674 = vpop.f32.mrf.mxu0
        %v675 = vadd.f32 0.0, %v674
        %676 = vdwg.mxu0
        %v677 = vadd.f32 %v285, %v603
        %v678 = vadd.f32 %v286, %v617
        %v679 = vadd.f32 %v287, %v631
        %v680 = vadd.f32 %v288, %v645
        %v681 = vadd.f32 %v289, %v659
        %v682 = vadd.f32 %v290, %v673
        %v683 = vadd.f32 %v291, %v605
        %v684 = vadd.f32 %v292, %v619
        %v685 = vadd.f32 %v293, %v633
        %v686 = vadd.f32 %v294, %v647
        %v687 = vadd.f32 %v295, %v661
        %v688 = vadd.f32 %v296, %v675
        %689 = vst [vmem:[#allocation2] sm:$0xff] %v677
        %690 = vst [vmem:[#allocation2 + $0x8] sm:$0xff] %v678
        %691 = vst [vmem:[#allocation2 + $0x10] sm:$0xff] %v679
        %692 = vst [vmem:[#allocation2 + $0x18] sm:$0xff] %v680
        %693 = vst [vmem:[#allocation2 + $0x20] sm:$0xff] %v681
        %694 = vst [vmem:[#allocation2 + $0x28] sm:$0xff] %v682
        %695 = vst [vmem:[#allocation2 + $0x30] sm:$0xff] %v683
        %696 = vst [vmem:[#allocation2 + $0x38] sm:$0xff] %v684
        %697 = vst [vmem:[#allocation2 + $0x40] sm:$0xff] %v685
        %698 = vst [vmem:[#allocation2 + $0x48] sm:$0xff] %v686
        %699 = vst [vmem:[#allocation2 + $0x50] sm:$0xff] %v687
        %700 = vst [vmem:[#allocation2 + $0x58] sm:$0xff] %v688
        // Predicated region
        $region41: #{transformer_encoder_layer.7} parent=31 // pred_check
          %p701 = pneg %p269
        $region42: #{transformer_encoder_layer.7} parent=31 // pred_check_branch
          %703 = sbr.rel (%p701) target = $region44
        $region43: #{transformer_encoder_layer.7} parent=31 // pred_region
          %v704 = vld [vmem:[#allocation2] sm:$0xff]
          %v705 = vld [vmem:[#allocation2 + $0x8] sm:$0xff]
          %v706 = vld [vmem:[#allocation2 + $0x10] sm:$0xff]
          %v707 = vld [vmem:[#allocation2 + $0x18] sm:$0xff]
          %v708 = vld [vmem:[#allocation2 + $0x20] sm:$0xff]
          %v709 = vld [vmem:[#allocation2 + $0x28] sm:$0xff]
          %v710 = vld [vmem:[#allocation2 + $0x30] sm:$0xff]
          %v711 = vld [vmem:[#allocation2 + $0x38] sm:$0xff]
          %v712 = vld [vmem:[#allocation2 + $0x40] sm:$0xff]
          %v713 = vld [vmem:[#allocation2 + $0x48] sm:$0xff]
          %v714 = vld [vmem:[#allocation2 + $0x50] sm:$0xff]
          %v715 = vld [vmem:[#allocation2 + $0x58] sm:$0xff]
          %v716 = vld [vmem:[%s265] sm:$0x3f]
          %v718 = vperm.slane %v716, 0
          %v719 = vperm.slane %v716, 1
          %v720 = vperm.slane %v716, 2
          %v721 = vperm.slane %v716, 3
          %v722 = vperm.slane %v716, 4
          %v723 = vperm.slane %v716, 5
          %v730 = vadd.f32 %v704, %v718
          %v731 = vadd.f32 %v705, %v719
          %v732 = vadd.f32 %v706, %v720
          %v733 = vadd.f32 %v707, %v721
          %v734 = vadd.f32 %v708, %v722
          %v735 = vadd.f32 %v709, %v723
          %v736 = vadd.f32 %v710, %v718
          %v737 = vadd.f32 %v711, %v719
          %v738 = vadd.f32 %v712, %v720
          %v739 = vadd.f32 %v713, %v721
          %v740 = vadd.f32 %v714, %v722
          %v741 = vadd.f32 %v715, %v723
          %v742 = vpack.c.bf16 %v731, %v730
          %v743 = vpack.c.bf16 %v733, %v732
          %v744 = vpack.c.bf16 %v735, %v734
          %v745 = vpack.c.bf16 %v737, %v736
          %v746 = vpack.c.bf16 %v739, %v738
          %v747 = vpack.c.bf16 %v741, %v740
          %748 = vst [vmem:[%s250] sm:$0xff] %v742
          %749 = vst [vmem:[%s250 + $0x8] sm:$0xff] %v743
          %750 = vst [vmem:[%s250 + $0x10] sm:$0xff] %v744
          %751 = vst [vmem:[%s250 + $0x18] sm:$0xff] %v745
          %752 = vst [vmem:[%s250 + $0x20] sm:$0xff] %v746
          %753 = vst [vmem:[%s250 + $0x28] sm:$0xff] %v747
        $region44: #{transformer_encoder_layer.7} parent=31 // pred_fallthru
          _
        %s754 = sand.u32 %s128, 1
        %s755 = sand.u32 %s128, 1
        %s756 = smul.addr %s755, 48
        %s757 = scalar_lea.vmem [#allocation5], %s756
        // Predicated region
        $region45: #{transformer_encoder_layer.7} parent=31 // pred_check
          %p758 = pneg %p138
        $region46: #{transformer_encoder_layer.7} parent=31 // pred_check_branch
          %760 = sbr.rel (%p758) target = $region48
        $region47: #{transformer_encoder_layer.7} parent=31 // pred_region
          %s761 = smul.u32 2, %s22
          %s762 = smul.u32 6, %s23
          %s763 = smul.addr %s761, 12
          %s764 = sadd.s32 %s762, %s763
          %s765 = smul.addr %s764, 4
          %s766 = scalar_lea.vmem %s3, %s765
          // Predicated region
          $region49: #{transformer_encoder_layer.7} parent=47 // pred_check
            _
          $region50: #{transformer_encoder_layer.7} parent=47 // pred_check_branch
            %768 = sbr.rel (0) target = $region52
          $region51: #{transformer_encoder_layer.7} parent=47 // pred_region
            // Predicated region
            $region53: #{transformer_encoder_layer.7} parent=51 // pred_check
              _
            $region54: #{transformer_encoder_layer.7} parent=51 // pred_check_branch
              %770 = sbr.rel (0) target = $region56
            $region55: #{transformer_encoder_layer.7} parent=51 // pred_region
              loop: start=0, step=1, limit=1
              $region57: #{transformer_encoder_layer.7} parent=55 // loop_pre_header
                _
              $region58: #{transformer_encoder_layer.7} parent=55 // loop_header
                %s772 = sphi 0, %s776
                %p773 = scmp.ge.s32.totalorder %s772, 1
                %s777 = sphi %s757, %s757
                %s778 = sphi %s766, %s766
              $region59: #{transformer_encoder_layer.7} parent=55 // loop_header_branch
                %775 = sbr.rel (%p773) target = $region63
              $region60: #{transformer_encoder_layer.7} parent=55 // loop_body
                %v779 = vld [vmem:[%s777] sm:$0xff]
                %780 = vst [vmem:[%s778] sm:$0xff] %v779
                %v781 = vld [vmem:[%s777 + $0x8] sm:$0xff]
                %782 = vst [vmem:[%s778 + $0x8] sm:$0xff] %v781
                %v783 = vld [vmem:[%s777 + $0x10] sm:$0xff]
                %784 = vst [vmem:[%s778 + $0x10] sm:$0xff] %v783
                %v785 = vld [vmem:[%s777 + $0x18] sm:$0xff]
                %786 = vst [vmem:[%s778 + $0x30] sm:$0xff] %v785
                %v787 = vld [vmem:[%s777 + $0x20] sm:$0xff]
                %788 = vst [vmem:[%s778 + $0x38] sm:$0xff] %v787
                %v789 = vld [vmem:[%s777 + $0x28] sm:$0xff]
                %790 = vst [vmem:[%s778 + $0x40] sm:$0xff] %v789
              $region61: #{transformer_encoder_layer.7} parent=55 // loop_footer
                %s776 = sadd.s32 1, %s772
              $region62: #{transformer_encoder_layer.7} parent=55 // loop_footer_branch
                %771 = sbr.rel target = $region58
              $region63: #{transformer_encoder_layer.7} parent=55 // loop_exit
                _
            $region56: #{transformer_encoder_layer.7} parent=51 // pred_fallthru
              _
            // Predicated region
            $region64: #{transformer_encoder_layer.7} parent=51 // pred_check
              _
            $region65: #{transformer_encoder_layer.7} parent=51 // pred_check_branch
              %792 = sbr.rel target = $region67
            $region66: #{transformer_encoder_layer.7} parent=51 // pred_region
              _
            $region67: #{transformer_encoder_layer.7} parent=51 // pred_fallthru
              _
          $region52: #{transformer_encoder_layer.7} parent=47 // pred_fallthru
            _
          %793 = vnop
        $region48: #{transformer_encoder_layer.7} parent=31 // pred_fallthru
          _
      $region32: #{transformer_encoder_layer.7} parent=5 // pred_fallthru
        _
      %p794 = scmp.le.s32.totalorder 2, %s12
      // Predicated region
      $region68: #{transformer_encoder_layer.7} parent=5 // pred_check
        %p795 = pneg %p794
      $region69: #{transformer_encoder_layer.7} parent=5 // pred_check_branch
        %797 = sbr.rel (%p795) target = $region71
      $region70: #{transformer_encoder_layer.7} parent=5 // pred_region
        %s798 = ssub.s32 %s12, 2
        // Predicated region
        $region72: #{transformer_encoder_layer.7} parent=70 // pred_check
          %p799 = pneg %p144
        $region73: #{transformer_encoder_layer.7} parent=70 // pred_check_branch
          %801 = sbr.rel (%p799) target = $region75
        $region74: #{transformer_encoder_layer.7} parent=70 // pred_region
          %s802 = sand.u32 %s129, 1
          %s803 = sand.u32 %s129, 1
          %s804 = smul.addr %s803, 48
          %s805 = scalar_lea.vmem [#allocation5], %s804
        $region75: #{transformer_encoder_layer.7} parent=70 // pred_fallthru
          _
      $region71: #{transformer_encoder_layer.7} parent=5 // pred_fallthru
        _
    $region6: #{transformer_encoder_layer.7} parent=1 // loop_footer
      %s16 = sadd.s32 1, %s12
    $region7: #{transformer_encoder_layer.7} parent=1 // loop_footer_branch
      %11 = sbr.rel target = $region3
    $region8: #{transformer_encoder_layer.7} parent=1 // loop_exit
      _
    %806 = vsyncpa [#allocation4], 1
    %s807 = scalar_lea.sflag [#allocation4], 1
    %808 = vsyncpa %s807, 1

// kernel: transformer_encoder_layer.13
$region0: #{transformer_encoder_layer.13}
  #allocation0 [shape = 'u32[]', space=smem, size = 0x4, offset = 0x4, fixed_abs, tag = 'smem constant byte address 0x4 - core index']
  #allocation1 [shape = 'u32[72,128]{1,0:T(1,128)}', space=vmem, size = 0x9000, scoped, tag = 'internal scratch']
  %s0 = inlined_call_operand.vmem [shape: bf16[16,128], index: 0, kind: input, shape index: {}]
  %s1 = inlined_call_operand.vmem [shape: f32[1,128], index: 1, kind: input, shape index: {}]
  %s2 = inlined_call_operand.vmem [shape: f32[1,128], index: 2, kind: input, shape index: {}]
  %s3 = inlined_call_operand.vmem [shape: f32[16,128], index: 3, kind: output, shape index: {}]
  %s4 = sld [smem:[#allocation0]]
  $region22: #{transformer_encoder_layer.13} parent=0
    _
  %s6 = ssub.s32 1, %s4
  %s7 = scalar_select 0, %s6, %s4
  // Predicated region
  $region2: #{transformer_encoder_layer.13} parent=0 // pred_check
    _
  $region3: #{transformer_encoder_layer.13} parent=0 // pred_check_branch
    %9 = sbr.rel (0) target = $region5
  $region4: #{transformer_encoder_layer.13} parent=0 // pred_region
    _
  $region5: #{transformer_encoder_layer.13} parent=0 // pred_fallthru
    _
  // Predicated region
  $region6: #{transformer_encoder_layer.13} parent=0 // pred_check
    _
  $region7: #{transformer_encoder_layer.13} parent=0 // pred_check_branch
    %11 = sbr.rel (0) target = $region9
  $region8: #{transformer_encoder_layer.13} parent=0 // pred_region
    _
  $region9: #{transformer_encoder_layer.13} parent=0 // pred_fallthru
    _
  // Predicated region
  $region10: #{transformer_encoder_layer.13} parent=0 // pred_check
    _
  $region11: #{transformer_encoder_layer.13} parent=0 // pred_check_branch
    %13 = sbr.rel (0) target = $region13
  $region12: #{transformer_encoder_layer.13} parent=0 // pred_region
    _
  $region13: #{transformer_encoder_layer.13} parent=0 // pred_fallthru
    _
  %v14 = vld [vmem:[%s0] sm:$0xf]
  %v15 = vld [vmem:[%s0 + $0x4] sm:$0xf]
  %v16 = vunpack.c.l.bf16 %v14
  %v17 = vunpack.c.l.bf16 %v15
  %18 = vadd.xlane.f32.xlu0 %v16
  %v19 = vpop.xlane.xlu0 %18
  %20 = vadd.xlane.f32.xlu0 %v17
  %v21 = vpop.xlane.xlu0 %20
  %v22 = vrcp.pop 128.0
  %v23 = vmul.f32 128.0, %v22
  %v24 = vsub.f32 1.0, %v23
  %v25 = vmul.f32 %v22, %v24
  %v26 = vadd.f32 %v22, %v25
  %vm27 = vweird.f32 %v22
  %v28 = vsel %vm27, %v22, %v26
  %v29 = vmul.f32 %v19, %v28
  %v30 = vmul.f32 %v21, %v28
  %v31 = vsub.f32 %v16, %v29
  %v32 = vsub.f32 %v17, %v30
  %v33 = vmul.f32 %v31, %v31
  %v34 = vmul.f32 %v32, %v32
  %35 = vadd.xlane.f32.xlu0 %v33
  %v36 = vpop.xlane.xlu0 %35
  %37 = vadd.xlane.f32.xlu0 %v34
  %v38 = vpop.xlane.xlu0 %37
  %v39 = vmul.f32 %v36, %v28
  %v40 = vmul.f32 %v38, %v28
  %v41 = vadd.f32 %v39, 1e-05
  %v42 = vadd.f32 %v40, 1e-05
  %v43 = vrsqrt.pop %v41
  %v44 = vmul.f32 %v43, %v41
  %v45 = vmul.f32 %v44, %v43
  %v46 = vmul.f32 0.5, %v45
  %v47 = vsub.f32 1.5, %v46
  %v48 = vmul.f32 %v43, %v47
  %vm49 = vweird.f32 %v41
  %vm50 = vweird.f32 %v43
  %vm51 = vmor %vm49, %vm50
  %v52 = vsel %vm51, %v43, %v48
  %v53 = vrsqrt.pop %v42
  %v54 = vmul.f32 %v53, %v42
  %v55 = vmul.f32 %v54, %v53
  %v56 = vmul.f32 0.5, %v55
  %v57 = vsub.f32 1.5, %v56
  %v58 = vmul.f32 %v53, %v57
  %vm59 = vweird.f32 %v42
  %vm60 = vweird.f32 %v53
  %vm61 = vmor %vm59, %vm60
  %v62 = vsel %vm61, %v53, %v58
  %v63 = vmul.f32 %v31, %v52
  %v64 = vmul.f32 %v32, %v62
  %v65 = vld [vmem:[%s1] sm:$0x1]
  %v67 = vperm.slane %v65, 0
  %v69 = vmul.f32 %v63, %v67
  %v70 = vmul.f32 %v64, %v67
  %v71 = vld [vmem:[%s2] sm:$0x1]
  %v73 = vperm.slane %v71, 0
  %v75 = vadd.f32 %v69, %v73
  %v76 = vadd.f32 %v70, %v73
  %77 = vst [vmem:[%s3] sm:$0xff] %v75
  %78 = vst [vmem:[%s3 + $0x8] sm:$0xff] %v76
  // Predicated region
  $region14: #{transformer_encoder_layer.13} parent=0 // pred_check
    _
  $region15: #{transformer_encoder_layer.13} parent=0 // pred_check_branch
    %80 = sbr.rel (0) target = $region17
  $region16: #{transformer_encoder_layer.13} parent=0 // pred_region
    _
  $region17: #{transformer_encoder_layer.13} parent=0 // pred_fallthru
    _
  // Predicated region
  $region18: #{transformer_encoder_layer.13} parent=0 // pred_check
    _
  $region19: #{transformer_encoder_layer.13} parent=0 // pred_check_branch
    %82 = sbr.rel (0) target = $region21
  $region20: #{transformer_encoder_layer.13} parent=0 // pred_region
    _
  $region21: #{transformer_encoder_layer.13} parent=0 // pred_fallthru
    _

// kernel: transformer_encoder_layer.11
$region0: #{transformer_encoder_layer.11}
  #allocation0 [shape = 'u32[]', space=smem, size = 0x4, offset = 0x4, fixed_abs, tag = 'smem constant byte address 0x4 - core index']
  #allocation1 [shape = 'u32[72,128]{1,0:T(1,128)}', space=vmem, size = 0x9000, scoped, tag = 'internal scratch']
  #allocation2 [shape = 'f32[16,512]{1,0:T(8,128)}', space=vmem, size = 0x8000, scoped, tag = 'scratch operand']
  %s0 = inlined_call_operand.vmem [shape: bf16[16,128], index: 0, kind: input, shape index: {}]
  %s1 = inlined_call_operand.hbm [shape: bf16[128,512], index: 1, kind: input, shape index: {}]
  %s2 = inlined_call_operand.vmem [shape: f32[1,512], index: 2, kind: input, shape index: {}]
  %s3 = inlined_call_operand.vmem [shape: bf16[16,512], index: 3, kind: output, shape index: {}]
  %s4 = sld [smem:[#allocation0]]
  $region34: #{transformer_encoder_layer.11} parent=0
    _
  %s6 = ssub.s32 1, %s4
  %s7 = scalar_select 0, %s6, %s4
  $region1: #{transformer_encoder_layer.11} parent=0
    #allocation3 [shape = 'u8[131072]{0}', space=vmem, size = 0x20000, scoped, tag = 'input window, operand 1, single buffered']
    #allocation4 [shape = 's32[1]{0}', space=sflag, size = 0x4, scoped, tag = 'scoped memory for transformer_encoder_layer.11']
    %8 = vsyncpa [#allocation4], 0
    // Predicated region
    $region2: #{transformer_encoder_layer.11} parent=1 // pred_check
      _
    $region3: #{transformer_encoder_layer.11} parent=1 // pred_check_branch
      %10 = sbr.rel (0) target = $region5
    $region4: #{transformer_encoder_layer.11} parent=1 // pred_region
      _
    $region5: #{transformer_encoder_layer.11} parent=1 // pred_fallthru
      _
    // Predicated region
    $region6: #{transformer_encoder_layer.11} parent=1 // pred_check
      _
    $region7: #{transformer_encoder_layer.11} parent=1 // pred_check_branch
      %12 = sbr.rel (0) target = $region9
    $region8: #{transformer_encoder_layer.11} parent=1 // pred_region
      %14 = vsyncadd [#allocation4], 0
      %s15 = sshll.u32 %s1, 4
      %s16 = int_to_ptr.hbm [resolvable:$true] %s15
      %s17 = sshll.u32 [#allocation3], 4
      %s18 = int_to_ptr.vmem [resolvable:$true] %s17
      %23 = dma.hbm_to_vmem [thread:$0]  %s16, 4096, %s18, [#allocation4], 256, 256, 16
    $region9: #{transformer_encoder_layer.11} parent=1 // pred_fallthru
      _
    // Predicated region
    $region10: #{transformer_encoder_layer.11} parent=1 // pred_check
      _
    $region11: #{transformer_encoder_layer.11} parent=1 // pred_check_branch
      %25 = sbr.rel (0) target = $region13
    $region12: #{transformer_encoder_layer.11} parent=1 // pred_region
      _
    $region13: #{transformer_encoder_layer.11} parent=1 // pred_fallthru
      _
    // Predicated region
    $region14: #{transformer_encoder_layer.11} parent=1 // pred_check
      _
    $region15: #{transformer_encoder_layer.11} parent=1 // pred_check_branch
      %27 = sbr.rel (0) target = $region17
    $region16: #{transformer_encoder_layer.11} parent=1 // pred_region
      %29 = dma.done [#allocation4], 4096
    $region17: #{transformer_encoder_layer.11} parent=1 // pred_fallthru
      _
    %p30 = scmp.eq.s32.totalorder 0, 0
    // Predicated region
    $region18: #{transformer_encoder_layer.11} parent=1 // pred_check
      %p31 = pneg %p30
    $region19: #{transformer_encoder_layer.11} parent=1 // pred_check_branch
      %33 = sbr.rel (%p31) target = $region21
    $region20: #{transformer_encoder_layer.11} parent=1 // pred_region
      %34 = vst [vmem:[#allocation2] sm:$0xff] 0.0
      %35 = vst [vmem:[#allocation2 + $0x8] sm:$0xff] 0.0
      %36 = vst [vmem:[#allocation2 + $0x10] sm:$0xff] 0.0
      %37 = vst [vmem:[#allocation2 + $0x18] sm:$0xff] 0.0
      %38 = vst [vmem:[#allocation2 + $0x20] sm:$0xff] 0.0
      %39 = vst [vmem:[#allocation2 + $0x28] sm:$0xff] 0.0
      %40 = vst [vmem:[#allocation2 + $0x30] sm:$0xff] 0.0
      %41 = vst [vmem:[#allocation2 + $0x38] sm:$0xff] 0.0
    $region21: #{transformer_encoder_layer.11} parent=1 // pred_fallthru
      _
    %v42 = vld [vmem:[#allocation2] sm:$0xff]
    %v43 = vld [vmem:[#allocation2 + $0x8] sm:$0xff]
    %v44 = vld [vmem:[#allocation2 + $0x10] sm:$0xff]
    %v45 = vld [vmem:[#allocation2 + $0x18] sm:$0xff]
    %v46 = vld [vmem:[#allocation2 + $0x20] sm:$0xff]
    %v47 = vld [vmem:[#allocation2 + $0x28] sm:$0xff]
    %v48 = vld [vmem:[#allocation2 + $0x30] sm:$0xff]
    %v49 = vld [vmem:[#allocation2 + $0x38] sm:$0xff]
    %v50 = vld [vmem:[%s0] sm:$0xf]
    %v51 = vld [vmem:[%s0 + $0x4] sm:$0xf]
    %v52 = vld [vmem:[#allocation3] sm:$0xff]
    %v53 = vld [vmem:[#allocation3 + $0x8] sm:$0xff]
    %v54 = vld [vmem:[#allocation3 + $0x10] sm:$0xff]
    %v55 = vld [vmem:[#allocation3 + $0x18] sm:$0xff]
    %v56 = vld [vmem:[#allocation3 + $0x20] sm:$0xff]
    %v57 = vld [vmem:[#allocation3 + $0x28] sm:$0xff]
    %v58 = vld [vmem:[#allocation3 + $0x30] sm:$0xff]
    %v59 = vld [vmem:[#allocation3 + $0x38] sm:$0xff]
    %v60 = vld [vmem:[#allocation3 + $0x40] sm:$0xff]
    %v61 = vld [vmem:[#allocation3 + $0x48] sm:$0xff]
    %v62 = vld [vmem:[#allocation3 + $0x50] sm:$0xff]
    %v63 = vld [vmem:[#allocation3 + $0x58] sm:$0xff]
    %v64 = vld [vmem:[#allocation3 + $0x60] sm:$0xff]
    %v65 = vld [vmem:[#allocation3 + $0x68] sm:$0xff]
    %v66 = vld [vmem:[#allocation3 + $0x70] sm:$0xff]
    %v67 = vld [vmem:[#allocation3 + $0x78] sm:$0xff]
    %v68 = vld [vmem:[#allocation3 + $0x80] sm:$0xff]
    %v69 = vld [vmem:[#allocation3 + $0x88] sm:$0xff]
    %v70 = vld [vmem:[#allocation3 + $0x90] sm:$0xff]
    %v71 = vld [vmem:[#allocation3 + $0x98] sm:$0xff]
    %v72 = vld [vmem:[#allocation3 + $0xa0] sm:$0xff]
    %v73 = vld [vmem:[#allocation3 + $0xa8] sm:$0xff]
    %v74 = vld [vmem:[#allocation3 + $0xb0] sm:$0xff]
    %v75 = vld [vmem:[#allocation3 + $0xb8] sm:$0xff]
    %v76 = vld [vmem:[#allocation3 + $0xc0] sm:$0xff]
    %v77 = vld [vmem:[#allocation3 + $0xc8] sm:$0xff]
    %v78 = vld [vmem:[#allocation3 + $0xd0] sm:$0xff]
    %v79 = vld [vmem:[#allocation3 + $0xd8] sm:$0xff]
    %v80 = vld [vmem:[#allocation3 + $0xe0] sm:$0xff]
    %v81 = vld [vmem:[#allocation3 + $0xe8] sm:$0xff]
    %v82 = vld [vmem:[#allocation3 + $0xf0] sm:$0xff]
    %v83 = vld [vmem:[#allocation3 + $0xf8] sm:$0xff]
    %v86 = vunpack.c.l.b16 %v50
    %v87 = vunpack.c.l.b16 %v51
    %v88 = vpack.c.b16 %v87, %v86
    %v122 = vunpack.c.l.b16 %v52
    %v123 = vunpack.c.h.b16 %v52
    %v124 = vunpack.c.l.b16 %v53
    %v125 = vunpack.c.h.b16 %v53
    %v126 = vunpack.c.l.b16 %v54
    %v127 = vunpack.c.h.b16 %v54
    %v128 = vunpack.c.l.b16 %v55
    %v129 = vunpack.c.h.b16 %v55
    %v130 = vunpack.c.l.b16 %v56
    %v131 = vunpack.c.h.b16 %v56
    %v132 = vunpack.c.l.b16 %v57
    %v133 = vunpack.c.h.b16 %v57
    %v134 = vunpack.c.l.b16 %v58
    %v135 = vunpack.c.h.b16 %v58
    %v136 = vunpack.c.l.b16 %v59
    %v137 = vunpack.c.h.b16 %v59
    %v138 = vunpack.c.l.b16 %v60
    %v139 = vunpack.c.h.b16 %v60
    %v140 = vunpack.c.l.b16 %v61
    %v141 = vunpack.c.h.b16 %v61
    %v142 = vunpack.c.l.b16 %v62
    %v143 = vunpack.c.h.b16 %v62
    %v144 = vunpack.c.l.b16 %v63
    %v145 = vunpack.c.h.b16 %v63
    %v146 = vunpack.c.l.b16 %v64
    %v147 = vunpack.c.h.b16 %v64
    %v148 = vunpack.c.l.b16 %v65
    %v149 = vunpack.c.h.b16 %v65
    %v150 = vunpack.c.l.b16 %v66
    %v151 = vunpack.c.h.b16 %v66
    %v152 = vunpack.c.l.b16 %v67
    %v153 = vunpack.c.h.b16 %v67
    %v154 = vunpack.c.l.b16 %v68
    %v155 = vunpack.c.h.b16 %v68
    %v156 = vunpack.c.l.b16 %v69
    %v157 = vunpack.c.h.b16 %v69
    %v158 = vunpack.c.l.b16 %v70
    %v159 = vunpack.c.h.b16 %v70
    %v160 = vunpack.c.l.b16 %v71
    %v161 = vunpack.c.h.b16 %v71
    %v162 = vunpack.c.l.b16 %v72
    %v163 = vunpack.c.h.b16 %v72
    %v164 = vunpack.c.l.b16 %v73
    %v165 = vunpack.c.h.b16 %v73
    %v166 = vunpack.c.l.b16 %v74
    %v167 = vunpack.c.h.b16 %v74
    %v168 = vunpack.c.l.b16 %v75
    %v169 = vunpack.c.h.b16 %v75
    %v170 = vunpack.c.l.b16 %v76
    %v171 = vunpack.c.h.b16 %v76
    %v172 = vunpack.c.l.b16 %v77
    %v173 = vunpack.c.h.b16 %v77
    %v174 = vunpack.c.l.b16 %v78
    %v175 = vunpack.c.h.b16 %v78
    %v176 = vunpack.c.l.b16 %v79
    %v177 = vunpack.c.h.b16 %v79
    %v178 = vunpack.c.l.b16 %v80
    %v179 = vunpack.c.h.b16 %v80
    %v180 = vunpack.c.l.b16 %v81
    %v181 = vunpack.c.h.b16 %v81
    %v182 = vunpack.c.l.b16 %v82
    %v183 = vunpack.c.h.b16 %v82
    %v184 = vunpack.c.l.b16 %v83
    %v185 = vunpack.c.h.b16 %v83
    %v186 = vpack.c.b16 %v126, %v122
    %v187 = vpack.c.b16 %v127, %v123
    %v188 = vpack.c.b16 %v128, %v124
    %v189 = vpack.c.b16 %v129, %v125
    %v190 = vpack.c.b16 %v134, %v130
    %v191 = vpack.c.b16 %v135, %v131
    %v192 = vpack.c.b16 %v136, %v132
    %v193 = vpack.c.b16 %v137, %v133
    %v194 = vpack.c.b16 %v142, %v138
    %v195 = vpack.c.b16 %v143, %v139
    %v196 = vpack.c.b16 %v144, %v140
    %v197 = vpack.c.b16 %v145, %v141
    %v198 = vpack.c.b16 %v150, %v146
    %v199 = vpack.c.b16 %v151, %v147
    %v200 = vpack.c.b16 %v152, %v148
    %v201 = vpack.c.b16 %v153, %v149
    %v202 = vpack.c.b16 %v158, %v154
    %v203 = vpack.c.b16 %v159, %v155
    %v204 = vpack.c.b16 %v160, %v156
    %v205 = vpack.c.b16 %v161, %v157
    %v206 = vpack.c.b16 %v166, %v162
    %v207 = vpack.c.b16 %v167, %v163
    %v208 = vpack.c.b16 %v168, %v164
    %v209 = vpack.c.b16 %v169, %v165
    %v210 = vpack.c.b16 %v174, %v170
    %v211 = vpack.c.b16 %v175, %v171
    %v212 = vpack.c.b16 %v176, %v172
    %v213 = vpack.c.b16 %v177, %v173
    %v214 = vpack.c.b16 %v182, %v178
    %v215 = vpack.c.b16 %v183, %v179
    %v216 = vpack.c.b16 %v184, %v180
    %v217 = vpack.c.b16 %v185, %v181
    %250 = vmatpush.bf16.msra.mxu0 %v214
    %251 = vmatpush.bf16.msra.mxu0 %v210
    %252 = vmatpush.bf16.msra.mxu0 %v206
    %253 = vmatpush.bf16.msra.mxu0 %v202
    %254 = vmatpush.bf16.msra.mxu0 %v198
    %255 = vmatpush.bf16.msra.mxu0 %v194
    %256 = vmatpush.bf16.msra.mxu0 %v190
    %257 = vmatpush.bf16.msra.mxu0 %v186
    %258 = vmatmul.bf16.gmra.mxu0 %v88
    %v259 = vpop.f32.mrf.mxu0
    %v260 = vadd.f32 0.0, %v259
    %v261 = vpop.f32.mrf.mxu0
    %v262 = vadd.f32 0.0, %v261
    %263 = vdwg.mxu0
    %264 = vmatpush.bf16.msra.mxu0 %v215
    %265 = vmatpush.bf16.msra.mxu0 %v211
    %266 = vmatpush.bf16.msra.mxu0 %v207
    %267 = vmatpush.bf16.msra.mxu0 %v203
    %268 = vmatpush.bf16.msra.mxu0 %v199
    %269 = vmatpush.bf16.msra.mxu0 %v195
    %270 = vmatpush.bf16.msra.mxu0 %v191
    %271 = vmatpush.bf16.msra.mxu0 %v187
    %272 = vmatmul.bf16.gmra.mxu0 %v88
    %v273 = vpop.f32.mrf.mxu0
    %v274 = vadd.f32 0.0, %v273
    %v275 = vpop.f32.mrf.mxu0
    %v276 = vadd.f32 0.0, %v275
    %277 = vdwg.mxu0
    %278 = vmatpush.bf16.msra.mxu0 %v216
    %279 = vmatpush.bf16.msra.mxu0 %v212
    %280 = vmatpush.bf16.msra.mxu0 %v208
    %281 = vmatpush.bf16.msra.mxu0 %v204
    %282 = vmatpush.bf16.msra.mxu0 %v200
    %283 = vmatpush.bf16.msra.mxu0 %v196
    %284 = vmatpush.bf16.msra.mxu0 %v192
    %285 = vmatpush.bf16.msra.mxu0 %v188
    %286 = vmatmul.bf16.gmra.mxu0 %v88
    %v287 = vpop.f32.mrf.mxu0
    %v288 = vadd.f32 0.0, %v287
    %v289 = vpop.f32.mrf.mxu0
    %v290 = vadd.f32 0.0, %v289
    %291 = vdwg.mxu0
    %292 = vmatpush.bf16.msra.mxu0 %v217
    %293 = vmatpush.bf16.msra.mxu0 %v213
    %294 = vmatpush.bf16.msra.mxu0 %v209
    %295 = vmatpush.bf16.msra.mxu0 %v205
    %296 = vmatpush.bf16.msra.mxu0 %v201
    %297 = vmatpush.bf16.msra.mxu0 %v197
    %298 = vmatpush.bf16.msra.mxu0 %v193
    %299 = vmatpush.bf16.msra.mxu0 %v189
    %300 = vmatmul.bf16.gmra.mxu0 %v88
    %v301 = vpop.f32.mrf.mxu0
    %v302 = vadd.f32 0.0, %v301
    %v303 = vpop.f32.mrf.mxu0
    %v304 = vadd.f32 0.0, %v303
    %305 = vdwg.mxu0
    %v306 = vadd.f32 %v42, %v260
    %v307 = vadd.f32 %v43, %v274
    %v308 = vadd.f32 %v44, %v288
    %v309 = vadd.f32 %v45, %v302
    %v310 = vadd.f32 %v46, %v262
    %v311 = vadd.f32 %v47, %v276
    %v312 = vadd.f32 %v48, %v290
    %v313 = vadd.f32 %v49, %v304
    %314 = vst [vmem:[#allocation2] sm:$0xff] %v306
    %315 = vst [vmem:[#allocation2 + $0x8] sm:$0xff] %v307
    %316 = vst [vmem:[#allocation2 + $0x10] sm:$0xff] %v308
    %317 = vst [vmem:[#allocation2 + $0x18] sm:$0xff] %v309
    %318 = vst [vmem:[#allocation2 + $0x20] sm:$0xff] %v310
    %319 = vst [vmem:[#allocation2 + $0x28] sm:$0xff] %v311
    %320 = vst [vmem:[#allocation2 + $0x30] sm:$0xff] %v312
    %321 = vst [vmem:[#allocation2 + $0x38] sm:$0xff] %v313
    // Predicated region
    $region22: #{transformer_encoder_layer.11} parent=1 // pred_check
      %p322 = pneg %p30
    $region23: #{transformer_encoder_layer.11} parent=1 // pred_check_branch
      %324 = sbr.rel (%p322) target = $region25
    $region24: #{transformer_encoder_layer.11} parent=1 // pred_region
      %v325 = vld [vmem:[#allocation2] sm:$0xff]
      %v326 = vld [vmem:[#allocation2 + $0x8] sm:$0xff]
      %v327 = vld [vmem:[#allocation2 + $0x10] sm:$0xff]
      %v328 = vld [vmem:[#allocation2 + $0x18] sm:$0xff]
      %v329 = vld [vmem:[#allocation2 + $0x20] sm:$0xff]
      %v330 = vld [vmem:[#allocation2 + $0x28] sm:$0xff]
      %v331 = vld [vmem:[#allocation2 + $0x30] sm:$0xff]
      %v332 = vld [vmem:[#allocation2 + $0x38] sm:$0xff]
      %v333 = vld [vmem:[%s2] sm:$0xf]
      %v335 = vperm.slane %v333, 0
      %v336 = vperm.slane %v333, 1
      %v337 = vperm.slane %v333, 2
      %v338 = vperm.slane %v333, 3
      %v343 = vadd.f32 %v325, %v335
      %v344 = vadd.f32 %v326, %v336
      %v345 = vadd.f32 %v327, %v337
      %v346 = vadd.f32 %v328, %v338
      %v347 = vadd.f32 %v329, %v335
      %v348 = vadd.f32 %v330, %v336
      %v349 = vadd.f32 %v331, %v337
      %v350 = vadd.f32 %v332, %v338
      %v351 = vmax.f32 %v343, 0.0
      %v352 = vmax.f32 %v344, 0.0
      %v353 = vmax.f32 %v345, 0.0
      %v354 = vmax.f32 %v346, 0.0
      %v355 = vmax.f32 %v347, 0.0
      %v356 = vmax.f32 %v348, 0.0
      %v357 = vmax.f32 %v349, 0.0
      %v358 = vmax.f32 %v350, 0.0
      %v359 = vpack.c.bf16 %v352, %v351
      %v360 = vpack.c.bf16 %v354, %v353
      %v361 = vpack.c.bf16 %v356, %v355
      %v362 = vpack.c.bf16 %v358, %v357
      %363 = vst [vmem:[%s3] sm:$0xff] %v359
      %364 = vst [vmem:[%s3 + $0x8] sm:$0xff] %v360
      %365 = vst [vmem:[%s3 + $0x10] sm:$0xff] %v361
      %366 = vst [vmem:[%s3 + $0x18] sm:$0xff] %v362
    $region25: #{transformer_encoder_layer.11} parent=1 // pred_fallthru
      _
    // Predicated region
    $region26: #{transformer_encoder_layer.11} parent=1 // pred_check
      _
    $region27: #{transformer_encoder_layer.11} parent=1 // pred_check_branch
      %368 = sbr.rel (0) target = $region29
    $region28: #{transformer_encoder_layer.11} parent=1 // pred_region
      _
    $region29: #{transformer_encoder_layer.11} parent=1 // pred_fallthru
      _
    // Predicated region
    $region30: #{transformer_encoder_layer.11} parent=1 // pred_check
      _
    $region31: #{transformer_encoder_layer.11} parent=1 // pred_check_branch
      %370 = sbr.rel (0) target = $region33
    $region32: #{transformer_encoder_layer.11} parent=1 // pred_region
      _
    $region33: #{transformer_encoder_layer.11} parent=1 // pred_fallthru
      _
    %371 = vsyncpa [#allocation4], 1

</llo_original>
